<compile_context>
chip_gen: v6e
topology: v6e:2x2x1
jax: 0.10.0
libtpu: 0.0.40
codegen_flags: <defaults>
</compile_context>

<pallas_src>
import jax
import jax.numpy as jnp
from jax.experimental import pallas as pl
from jax.experimental.pallas import tpu as pltpu

_EPS = 1e-5
_LANES = 128


def _layernorm_kernel(x_ref, w_ref, b_ref, o_ref):
    """General path: normalized dim C is the full last (lane) dim of the block."""
    x = x_ref[...].astype(jnp.float32)                     # (TR, C)
    mu = jnp.mean(x, axis=-1, keepdims=True)               # XLU cross-lane reduce
    xc = x - mu
    var = jnp.mean(xc * xc, axis=-1, keepdims=True)        # unbiased=False
    y = xc * jax.lax.rsqrt(var + _EPS)                     # EUP rsqrt (own slot)
    o_ref[...] = (y * w_ref[...] + b_ref[...]).astype(o_ref.dtype)


def _layernorm_kernel_packed(x_ref, seg_ref, w_ref, b_ref, o_ref):
    """Lane-dense path for small C: each 128-lane row packs (128 // C) logical rows.

    seg_ref is a constant (128,128) block-diagonal matrix of 1/C; x @ seg yields the
    per-segment mean broadcast back across each C-lane segment (idle MXU, exact f32).
    """
    x = x_ref[...].astype(jnp.float32)                     # (TR, 128)
    seg = seg_ref[...]                                     # (128, 128) f32
    mu = jnp.dot(x, seg, precision=jax.lax.Precision.HIGHEST,
                 preferred_element_type=jnp.float32)
    xc = x - mu
    var = jnp.dot(xc * xc, seg, precision=jax.lax.Precision.HIGHEST,
                  preferred_element_type=jnp.float32)
    y = xc * jax.lax.rsqrt(var + _EPS)
    o_ref[...] = (y * w_ref[...] + b_ref[...]).astype(o_ref.dtype)


def _choose_tile_rows(rows, bytes_per_row, block_byte_budget):
    """Rows per block: as big as the byte budget allows, multiple of 8, and split
    into >= 2 grid steps when possible (v7x has 2 TensorCores per chip)."""
    if rows <= 8:
        return rows                                 # block == full extent (allowed)
    t = block_byte_budget // max(bytes_per_row, 1)
    t = max(8, min(t, rows))
    t = (t // 8) * 8
    if t >= rows and rows >= 16:
        half = ((rows + 1) // 2 + 7) // 8 * 8
        t = min(half, (rows // 8) * 8)
    return max(t, 8)


def with_bias_layernorm(x, weight, bias, *, block_byte_budget=2 * 1024 * 1024):
    """x: (..., C); weight, bias: (C,). Matches PyTorch WithBias_LayerNorm.forward."""
    orig_shape = x.shape
    C = int(orig_shape[-1])
    R = 1
    for d in orig_shape[:-1]:
        R *= int(d)

    itemsize = jnp.dtype(x.dtype).itemsize
    cost = pl.CostEstimate(
        flops=7 * R * C,
        transcendentals=R,
        bytes_accessed=2 * R * C * itemsize + 2 * C * 4,
    )
    cparams = pltpu.CompilerParams(
        dimension_semantics=("parallel",),
        vmem_limit_bytes=32 * 1024 * 1024,
    )

    # Pre-cast params once in the wrapper (no per-step casts in the kernel body).
    w32 = weight.astype(jnp.float32)
    b32 = bias.astype(jnp.float32)

    xf = x.reshape(R, C)

    packable = (C < _LANES) and (_LANES % C == 0) and ((R * C) % _LANES == 0)
    if packable:
        pack = _LANES // C
        rp = (R * C) // _LANES                      # packed rows; row-major fold is free
        xp = xf.reshape(rp, _LANES)
        wt = jnp.tile(w32, pack).reshape(1, _LANES)
        bt = jnp.tile(b32, pack).reshape(1, _LANES)
        lane = jnp.arange(_LANES)
        seg = jnp.where((lane[:, None] // C) == (lane[None, :] // C),
                        jnp.float32(1.0 / C), jnp.float32(0.0))   # (128,128)

        tr = _choose_tile_rows(rp, _LANES * itemsize, block_byte_budget)
        out = pl.pallas_call(
            _layernorm_kernel_packed,
            out_shape=jax.ShapeDtypeStruct((rp, _LANES), x.dtype),
            grid_spec=pltpu.PrefetchScalarGridSpec(
                num_scalar_prefetch=0,
                grid=(pl.cdiv(rp, tr),),
                in_specs=[
                    pl.BlockSpec((tr, _LANES), lambda i: (i, 0)),
                    pl.BlockSpec((_LANES, _LANES), lambda i: (0, 0)),
                    pl.BlockSpec((1, _LANES), lambda i: (0, 0)),
                    pl.BlockSpec((1, _LANES), lambda i: (0, 0)),
                ],
                out_specs=pl.BlockSpec((tr, _LANES), lambda i: (i, 0)),
            ),
            compiler_params=cparams,
            cost_estimate=cost,
        )(xp, seg, wt, bt)
        return out.reshape(orig_shape)

    # General path: C sits directly on the lane axis (lane-dense when C >= 128).
    w2 = w32.reshape(1, C)
    b2 = b32.reshape(1, C)
    tr = _choose_tile_rows(R, C * itemsize, block_byte_budget)
    out = pl.pallas_call(
        _layernorm_kernel,
        out_shape=jax.ShapeDtypeStruct((R, C), x.dtype),
        grid_spec=pltpu.PrefetchScalarGridSpec(
            num_scalar_prefetch=0,
            grid=(pl.cdiv(R, tr),),
            in_specs=[
                pl.BlockSpec((tr, C), lambda i: (i, 0)),
                pl.BlockSpec((1, C), lambda i: (0, 0)),
                pl.BlockSpec((1, C), lambda i: (0, 0)),
            ],
            out_specs=pl.BlockSpec((tr, C), lambda i: (i, 0)),
        ),
        compiler_params=cparams,
        cost_estimate=cost,
    )(xf, w2, b2)
    return out.reshape(orig_shape)


if __name__ == "__main__":
    key = jax.random.PRNGKey(0)
    B, N, C = 2, 16 * 16, 32  # (batch, H*W, hidden)
    x = jax.random.normal(key, (B, N, C), dtype=jnp.float32)

    # Parameters exactly as in WithBias_LayerNorm.__init__
    weight = jnp.ones((C,), dtype=jnp.float32)
    bias = jnp.zeros((C,), dtype=jnp.float32)

    y = with_bias_layernorm(x, weight, bias)
    y = jax.block_until_ready(y)

    # Pure-JAX reference (mean / unbiased=False var / eps inside sqrt)
    mu = jnp.mean(x, axis=-1, keepdims=True)
    var = jnp.mean((x - mu) ** 2, axis=-1, keepdims=True)
    ref = (x - mu) / jnp.sqrt(var + 1e-5) * weight + bias
    assert jnp.allclose(y, ref, atol=2e-5, rtol=2e-5), "mismatch vs reference"

    print("KERNEL_OK")
</pallas_src>

<mosaic_0001>
module attributes {stable_mosaic.version = 11 : i64} {
  func.func @_layernorm_kernel_packed(%arg0: i32, %arg1: memref<64x128xf32, #tpu.memory_space<vmem>>, %arg2: memref<128x128xf32, #tpu.memory_space<vmem>>, %arg3: memref<1x128xf32, #tpu.memory_space<vmem>>, %arg4: memref<1x128xf32, #tpu.memory_space<vmem>>, %arg5: memref<64x128xf32, #tpu.memory_space<vmem>>) attributes {dimension_semantics = [#tpu.dimension_semantics<parallel>], iteration_bounds = array<i64: 2>, scalar_prefetch = 0 : i64, scratch_operands = 0 : i64, tpu.core_type = #tpu.core_type<tc>, window_params = [{transform_indices = @transform_0, window_bounds = array<i64: 64, 128>}, {pipeline_mode = #tpu.pipeline_mode<synchronous>, transform_indices = @transform_1, window_bounds = array<i64: 128, 128>}, {pipeline_mode = #tpu.pipeline_mode<synchronous>, transform_indices = @transform_2, window_bounds = array<i64: 1, 128>}, {pipeline_mode = #tpu.pipeline_mode<synchronous>, transform_indices = @transform_3, window_bounds = array<i64: 1, 128>}, {transform_indices = @transform_4, window_bounds = array<i64: 64, 128>}]} {
    %c0 = arith.constant 0 : index
    %c0_0 = arith.constant 0 : index
    %0 = vector.load %arg1[%c0, %c0_0] : memref<64x128xf32, #tpu.memory_space<vmem>>, vector<64x128xf32>
    %c0_1 = arith.constant 0 : index
    %c0_2 = arith.constant 0 : index
    %1 = vector.load %arg2[%c0_1, %c0_2] : memref<128x128xf32, #tpu.memory_space<vmem>>, vector<128x128xf32>
    %cst = arith.constant dense<0.000000e+00> : vector<64x128xf32>
    %2 = tpu.matmul %0, %1, %cst {dimension_numbers = #tpu.dot_dimension_numbers<[1], [0], [0], [1], [0, 0, 1, 1], [], []>, precision = #tpu.contract_precision<fp32>} : vector<64x128xf32>, vector<128x128xf32>, vector<64x128xf32> -> vector<64x128xf32>
    %3 = arith.subf %0, %2 : vector<64x128xf32>
    %4 = arith.mulf %3, %3 : vector<64x128xf32>
    %cst_3 = arith.constant dense<0.000000e+00> : vector<64x128xf32>
    %5 = tpu.matmul %4, %1, %cst_3 {dimension_numbers = #tpu.dot_dimension_numbers<[1], [0], [0], [1], [0, 0, 1, 1], [], []>, precision = #tpu.contract_precision<fp32>} : vector<64x128xf32>, vector<128x128xf32>, vector<64x128xf32> -> vector<64x128xf32>
    %cst_4 = arith.constant 9.99999974E-6 : f32
    %6 = vector.broadcast %cst_4 : f32 to vector<64x128xf32>
    %7 = arith.addf %5, %6 : vector<64x128xf32>
    %8 = math.rsqrt %7 : vector<64x128xf32>
    %9 = arith.mulf %3, %8 : vector<64x128xf32>
    %c0_5 = arith.constant 0 : index
    %c0_6 = arith.constant 0 : index
    %10 = vector.load %arg3[%c0_5, %c0_6] : memref<1x128xf32, #tpu.memory_space<vmem>>, vector<1x128xf32>
    %11 = vector.broadcast %10 : vector<1x128xf32> to vector<64x128xf32>
    %12 = arith.mulf %9, %11 : vector<64x128xf32>
    %c0_7 = arith.constant 0 : index
    %c0_8 = arith.constant 0 : index
    %13 = vector.load %arg4[%c0_7, %c0_8] : memref<1x128xf32, #tpu.memory_space<vmem>>, vector<1x128xf32>
    %14 = vector.broadcast %13 : vector<1x128xf32> to vector<64x128xf32>
    %15 = arith.addf %12, %14 : vector<64x128xf32>
    %c0_9 = arith.constant 0 : index
    %c0_10 = arith.constant 0 : index
    %16 = vector.load %arg5[%c0_9, %c0_10] : memref<64x128xf32, #tpu.memory_space<vmem>>, vector<64x128xf32>
    tpu.vector_store %arg5[%c0_9, %c0_10], %15 {strides = array<i32>} : memref<64x128xf32, #tpu.memory_space<vmem>>, vector<64x128xf32>,
    return
  }
  func.func @transform_0(%arg0: i32) -> (i32, i32) {
    %c0_i32 = arith.constant 0 : i32
    %c0_i32_0 = arith.constant 0 : i32
    return %arg0, %c0_i32 : i32, i32
  }
  func.func @transform_1(%arg0: i32) -> (i32, i32) {
    %c0_i32 = arith.constant 0 : i32
    %c0_i32_0 = arith.constant 0 : i32
    %c0_i32_1 = arith.constant 0 : i32
    return %c0_i32, %c0_i32_0 : i32, i32
  }
  func.func @transform_2(%arg0: i32) -> (i32, i32) {
    %c0_i32 = arith.constant 0 : i32
    %c0_i32_0 = arith.constant 0 : i32
    %c0_i32_1 = arith.constant 0 : i32
    return %c0_i32, %c0_i32_0 : i32, i32
  }
  func.func @transform_3(%arg0: i32) -> (i32, i32) {
    %c0_i32 = arith.constant 0 : i32
    %c0_i32_0 = arith.constant 0 : i32
    %c0_i32_1 = arith.constant 0 : i32
    return %c0_i32, %c0_i32_0 : i32, i32
  }
  func.func @transform_4(%arg0: i32) -> (i32, i32) {
    %c0_i32 = arith.constant 0 : i32
    %c0_i32_0 = arith.constant 0 : i32
    return %arg0, %c0_i32 : i32, i32
  }
}

</mosaic_0001>

<llo_original>
// kernel: tpu_custom_call.1
$region0: #{tpu_custom_call.1}
  #allocation0 [shape = 'u32[]', space=smem, size = 0x4, offset = 0x4, fixed_abs, tag = 'smem constant byte address 0x4 - core index']
  #allocation1 [shape = 'u32[144,128]{1,0:T(1,128)}', space=vmem, size = 0x12000, scoped, tag = 'internal scratch']
  %s0 = inlined_call_operand.hbm [shape: f32[128,128], index: 0, kind: input, shape index: {}]
  %s1 = inlined_call_operand.hbm [shape: f32[128,128], index: 1, kind: input, shape index: {}]
  %s2 = inlined_call_operand.vmem [shape: f32[1,128], index: 2, kind: input, shape index: {}]
  %s3 = inlined_call_operand.vmem [shape: f32[1,128], index: 3, kind: input, shape index: {}]
  %s4 = inlined_call_operand.hbm [shape: f32[128,128], index: 4, kind: output, shape index: {}]
  %s5 = sld [smem:[#allocation0]]
  $region57: #{tpu_custom_call.1} parent=0
    _
  %s7 = ssub.s32 1, %s5
  %s8 = scalar_select 0, %s7, %s5
  $region1: #{tpu_custom_call.1} parent=0
    #allocation2 [shape = 'u8[65536]{0}', space=vmem, size = 0x10000, scoped, tag = 'input window, operand 0']
    #allocation3 [shape = 's32[2]{0}', space=sflag, size = 0x8, scoped, tag = 'scoped memory for tpu_custom_call.1']
    #allocation4 [shape = 's32[2]{0}', space=sflag, size = 0x8, scoped, tag = 'scoped memory for tpu_custom_call.1']
    #allocation5 [shape = 'u8[65536]{0}', space=vmem, size = 0x10000, scoped, tag = 'input window, operand 1, single buffered']
    #allocation6 [shape = 's32[1]{0}', space=sflag, size = 0x4, scoped, tag = 'scoped memory for tpu_custom_call.1']
    #allocation7 [shape = 'u8[65536]{0}', space=vmem, size = 0x10000, scoped, tag = 'output window, operand 0']
    %9 = vsyncpa [#allocation3], 0
    %s10 = scalar_lea.sflag [#allocation3], 1
    %11 = vsyncpa %s10, 0
    %12 = vsyncpa [#allocation6], 0
    %13 = vsyncpa [#allocation4], 0
    %s14 = scalar_lea.sflag [#allocation4], 1
    %15 = vsyncpa %s14, 0
    loop: start=0, step=1, limit=4
    $region2: #{tpu_custom_call.1} parent=1 // loop_pre_header
      _
    $region3: #{tpu_custom_call.1} parent=1 // loop_header
      %s17 = sphi 0, %s21
      %p18 = scmp.ge.s32.totalorder %s17, 4
      %s27 = sphi 0, %s29
      %s30 = sphi 0, %s27
      %s31 = sphi 0, %s30
      %s47 = sphi 0, %s31
      %s51 = sphi 0, %s51
      %s53 = sphi 0, %s51
      %s54 = sphi 0, %s53
      %s68 = sphi 0, %s54
      %s72 = sphi 0, %s72
      %s74 = sphi 0, %s72
      %s75 = sphi 0, %s74
      %s89 = sphi 0, %s75
      %s93 = sphi 0, %s93
      %s95 = sphi 0, %s93
      %s96 = sphi 0, %s95
      %s110 = sphi 0, %s96
      %s116 = sphi 0, %s118
      %s119 = sphi 0, %s116
      %s120 = sphi 0, %s119
      %s136 = sphi 0, %s120
    $region4: #{tpu_custom_call.1} parent=1 // loop_header_branch
      %20 = sbr.rel (%p18) target = $region8
    $region5: #{tpu_custom_call.1} parent=1 // loop_body
      %s22 = ssub.s32 %s17, 1
      %s23 = ssub.s32 %s17, 2
      %s24 = sadd.s32 %s17, 1
      %s25 = ssub.s32 %s17, %s24
      %p26 = scmp.eq.s32.totalorder %s25, 0
      %s28 = sadd.s32 %s27, 1
      %s29 = scalar_select %p26, %s27, %s28
      %p32 = pneg %p26
      %p33 = scmp.eq.s32.totalorder %s17, 1
      %p34 = por %p32, %p33
      %p35 = scmp.ne.s32.totalorder %s27, %s30
      %p36 = scmp.eq.s32.totalorder %s17, 0
      %p37 = por %p35, %p36
      %p38 = scmp.ne.s32.totalorder %s27, %s30
      %p39 = scmp.eq.s32.totalorder %s22, 1
      %p40 = por %p38, %p39
      %p41 = scmp.ne.s32.totalorder %s30, %s31
      %p42 = scmp.eq.s32.totalorder %s22, 0
      %p43 = por %p41, %p42
      %p44 = scmp.ne.s32.totalorder %s30, %s31
      %p45 = scmp.eq.s32.totalorder %s23, 1
      %p46 = por %p44, %p45
      %p48 = scmp.ne.s32.totalorder %s31, %s47
      %p49 = scmp.eq.s32.totalorder %s23, 0
      %p50 = por %p48, %p49
      %s52 = sadd.s32 %s51, 1
      %p55 = scmp.eq.s32.totalorder %s17, 1
      %p56 = scmp.ne.s32.totalorder %s51, %s53
      %p57 = scmp.eq.s32.totalorder %s17, 0
      %p58 = por %p56, %p57
      %p59 = scmp.ne.s32.totalorder %s51, %s53
      %p60 = scmp.eq.s32.totalorder %s22, 1
      %p61 = por %p59, %p60
      %p62 = scmp.ne.s32.totalorder %s53, %s54
      %p63 = scmp.eq.s32.totalorder %s22, 0
      %p64 = por %p62, %p63
      %p65 = scmp.ne.s32.totalorder %s53, %s54
      %p66 = scmp.eq.s32.totalorder %s23, 1
      %p67 = por %p65, %p66
      %p69 = scmp.ne.s32.totalorder %s54, %s68
      %p70 = scmp.eq.s32.totalorder %s23, 0
      %p71 = por %p69, %p70
      %s73 = sadd.s32 %s72, 1
      %p76 = scmp.eq.s32.totalorder %s17, 1
      %p77 = scmp.ne.s32.totalorder %s72, %s74
      %p78 = scmp.eq.s32.totalorder %s17, 0
      %p79 = por %p77, %p78
      %p80 = scmp.ne.s32.totalorder %s72, %s74
      %p81 = scmp.eq.s32.totalorder %s22, 1
      %p82 = por %p80, %p81
      %p83 = scmp.ne.s32.totalorder %s74, %s75
      %p84 = scmp.eq.s32.totalorder %s22, 0
      %p85 = por %p83, %p84
      %p86 = scmp.ne.s32.totalorder %s74, %s75
      %p87 = scmp.eq.s32.totalorder %s23, 1
      %p88 = por %p86, %p87
      %p90 = scmp.ne.s32.totalorder %s75, %s89
      %p91 = scmp.eq.s32.totalorder %s23, 0
      %p92 = por %p90, %p91
      %s94 = sadd.s32 %s93, 1
      %p97 = scmp.eq.s32.totalorder %s17, 1
      %p98 = scmp.ne.s32.totalorder %s93, %s95
      %p99 = scmp.eq.s32.totalorder %s17, 0
      %p100 = por %p98, %p99
      %p101 = scmp.ne.s32.totalorder %s93, %s95
      %p102 = scmp.eq.s32.totalorder %s22, 1
      %p103 = por %p101, %p102
      %p104 = scmp.ne.s32.totalorder %s95, %s96
      %p105 = scmp.eq.s32.totalorder %s22, 0
      %p106 = por %p104, %p105
      %p107 = scmp.ne.s32.totalorder %s95, %s96
      %p108 = scmp.eq.s32.totalorder %s23, 1
      %p109 = por %p107, %p108
      %p111 = scmp.ne.s32.totalorder %s96, %s110
      %p112 = scmp.eq.s32.totalorder %s23, 0
      %p113 = por %p111, %p112
      %s114 = ssub.s32 %s17, %s24
      %p115 = scmp.eq.s32.totalorder %s114, 0
      %s117 = sadd.s32 %s116, 1
      %s118 = scalar_select %p115, %s116, %s117
      %p121 = pneg %p115
      %p122 = scmp.eq.s32.totalorder %s17, 1
      %p123 = por %p121, %p122
      %p124 = scmp.ne.s32.totalorder %s116, %s119
      %p125 = scmp.eq.s32.totalorder %s17, 0
      %p126 = por %p124, %p125
      %p127 = scmp.ne.s32.totalorder %s116, %s119
      %p128 = scmp.eq.s32.totalorder %s22, 1
      %p129 = por %p127, %p128
      %p130 = scmp.ne.s32.totalorder %s119, %s120
      %p131 = scmp.eq.s32.totalorder %s22, 0
      %p132 = por %p130, %p131
      %p133 = scmp.ne.s32.totalorder %s119, %s120
      %p134 = scmp.eq.s32.totalorder %s23, 1
      %p135 = por %p133, %p134
      %p137 = scmp.ne.s32.totalorder %s120, %s136
      %p138 = scmp.eq.s32.totalorder %s23, 0
      %p139 = por %p137, %p138
      %p140 = scmp.le.s32.totalorder 1, %s17
      %p141 = scmp.lt.s32.totalorder %s17, 3
      %p142 = pnand %p140, %p141
      %p143 = pneg %p142
      // Predicated region
      $region9: #{tpu_custom_call.1} parent=5 // pred_check
        _
      $region10: #{tpu_custom_call.1} parent=5 // pred_check_branch
        %145 = sbr.rel (%p142) target = $region12
      $region11: #{tpu_custom_call.1} parent=5 // pred_region
        %s146 = ssub.s32 %s17, 1
        // Predicated region
        $region13: #{tpu_custom_call.1} parent=11 // pred_check
          %p147 = pneg %p64
        $region14: #{tpu_custom_call.1} parent=11 // pred_check_branch
          %149 = sbr.rel (%p147) target = $region16
        $region15: #{tpu_custom_call.1} parent=11 // pred_region
          %s151 = ssub.s32 2048, 2048
          %152 = vsyncadd [#allocation6], %s151
          %s153 = sshll.u32 [#allocation5], 4
          %s154 = int_to_ptr.vmem [resolvable:$true] %s153
          %159 = dma.hbm_to_vmem [thread:$0]  %s1, 2048, %s154, [#allocation6], 128, 128, 8
        $region16: #{tpu_custom_call.1} parent=11 // pred_fallthru
          _
        // Predicated region
        $region17: #{tpu_custom_call.1} parent=11 // pred_check
          %p160 = pneg %p85
        $region18: #{tpu_custom_call.1} parent=11 // pred_check_branch
          %162 = sbr.rel (%p160) target = $region20
        $region19: #{tpu_custom_call.1} parent=11 // pred_region
          _
        $region20: #{tpu_custom_call.1} parent=11 // pred_fallthru
          _
        // Predicated region
        $region21: #{tpu_custom_call.1} parent=11 // pred_check
          %p163 = pneg %p106
        $region22: #{tpu_custom_call.1} parent=11 // pred_check_branch
          %165 = sbr.rel (%p163) target = $region24
        $region23: #{tpu_custom_call.1} parent=11 // pred_region
          _
        $region24: #{tpu_custom_call.1} parent=11 // pred_fallthru
          _
      $region12: #{tpu_custom_call.1} parent=5 // pred_fallthru
        _
      %p166 = scmp.lt.s32.totalorder %s17, 2
      // Predicated region
      $region25: #{tpu_custom_call.1} parent=5 // pred_check
        %p167 = pneg %p166
      $region26: #{tpu_custom_call.1} parent=5 // pred_check_branch
        %169 = sbr.rel (%p167) target = $region28
      $region27: #{tpu_custom_call.1} parent=5 // pred_region
        // Predicated region
        $region29: #{tpu_custom_call.1} parent=27 // pred_check
          %p170 = pneg %p37
        $region30: #{tpu_custom_call.1} parent=27 // pred_check_branch
          %172 = sbr.rel (%p170) target = $region32
        $region31: #{tpu_custom_call.1} parent=27 // pred_region
          %s173 = sand.u32 %s27, 1
          %s174 = scalar_lea.sflag [#allocation3], %s173
          %s175 = sand.u32 %s27, 1
          %s176 = smul.addr %s175, 64
          %s177 = scalar_lea.vmem [#allocation2], %s176
          %s178 = smul.u32 8, %s17
          %s180 = ssub.s32 1024, 1024
          %181 = vsyncadd %s174, %s180
          %s182 = smul.addr %s178, 128
          %s183 = scalar_lea.hbm %s0, %s182
          %s184 = sshll.u32 %s177, 4
          %s185 = int_to_ptr.vmem [resolvable:$true] %s184
          %190 = dma.hbm_to_vmem [thread:$0]  %s183, 1024, %s185, %s174, 128, 128, 8
        $region32: #{tpu_custom_call.1} parent=27 // pred_fallthru
          _
      $region28: #{tpu_custom_call.1} parent=5 // pred_fallthru
        _
      %p191 = scmp.le.s32.totalorder 1, %s17
      %p192 = scmp.lt.s32.totalorder %s17, 3
      %p193 = pnand %p191, %p192
      %p194 = pneg %p193
      // Predicated region
      $region33: #{tpu_custom_call.1} parent=5 // pred_check
        _
      $region34: #{tpu_custom_call.1} parent=5 // pred_check_branch
        %196 = sbr.rel (%p193) target = $region36
      $region35: #{tpu_custom_call.1} parent=5 // pred_region
        %s197 = ssub.s32 %s17, 1
        %s198 = sand.u32 %s30, 1
        %s199 = scalar_lea.sflag [#allocation3], %s198
        %s200 = sand.u32 %s30, 1
        %s201 = smul.addr %s200, 64
        %s202 = scalar_lea.vmem [#allocation2], %s201
        // Predicated region
        $region37: #{tpu_custom_call.1} parent=35 // pred_check
          %p203 = pneg %p43
        $region38: #{tpu_custom_call.1} parent=35 // pred_check_branch
          %205 = sbr.rel (%p203) target = $region40
        $region39: #{tpu_custom_call.1} parent=35 // pred_region
          %206 = dma.done %s199, 1024
        $region40: #{tpu_custom_call.1} parent=35 // pred_fallthru
          _
        // Predicated region
        $region41: #{tpu_custom_call.1} parent=35 // pred_check
          %p207 = pneg %p64
        $region42: #{tpu_custom_call.1} parent=35 // pred_check_branch
          %209 = sbr.rel (%p207) target = $region44
        $region43: #{tpu_custom_call.1} parent=35 // pred_region
          %210 = dma.done [#allocation6], 2048
        $region44: #{tpu_custom_call.1} parent=35 // pred_fallthru
          _
        %s211 = sand.u32 %s30, 1
        %s212 = scalar_lea.sflag [#allocation3], %s211
        %s213 = sand.u32 %s30, 1
        %s214 = smul.addr %s213, 64
        %s215 = scalar_lea.vmem [#allocation2], %s214
        %p216 = pneg %p43
        %p217 = pneg %p40
        %p218 = pneg %p64
        %p219 = pneg %p61
        %p220 = pneg %p85
        %p221 = pneg %p82
        %p222 = pneg %p106
        %p223 = pneg %p103
        %p224 = pneg %p132
        %p225 = pneg %p129
        %s226 = sand.u32 %s119, 1
        %s227 = scalar_lea.sflag [#allocation4], %s226
        %s228 = sand.u32 %s119, 1
        %s229 = smul.addr %s228, 64
        %s230 = scalar_lea.vmem [#allocation7], %s229
        %s231 = smul.u32 8, %s22
        %s232 = smul.u32 8, %s22
        %v233 = vld [vmem:[%s202] sm:$0xff]
        %v234 = vld [vmem:[%s202 + $0x8] sm:$0xff]
        %v235 = vld [vmem:[%s202 + $0x10] sm:$0xff]
        %v236 = vld [vmem:[%s202 + $0x18] sm:$0xff]
        %v237 = vld [vmem:[%s202 + $0x20] sm:$0xff]
        %v238 = vld [vmem:[%s202 + $0x28] sm:$0xff]
        %v239 = vld [vmem:[%s202 + $0x30] sm:$0xff]
        %v240 = vld [vmem:[%s202 + $0x38] sm:$0xff]
        %v241 = vld [vmem:[#allocation5] sm:$0xff]
        %v242 = vld [vmem:[#allocation5 + $0x8] sm:$0xff]
        %v243 = vld [vmem:[#allocation5 + $0x10] sm:$0xff]
        %v244 = vld [vmem:[#allocation5 + $0x18] sm:$0xff]
        %v245 = vld [vmem:[#allocation5 + $0x20] sm:$0xff]
        %v246 = vld [vmem:[#allocation5 + $0x28] sm:$0xff]
        %v247 = vld [vmem:[#allocation5 + $0x30] sm:$0xff]
        %v248 = vld [vmem:[#allocation5 + $0x38] sm:$0xff]
        %v249 = vld [vmem:[#allocation5 + $0x40] sm:$0xff]
        %v250 = vld [vmem:[#allocation5 + $0x48] sm:$0xff]
        %v251 = vld [vmem:[#allocation5 + $0x50] sm:$0xff]
        %v252 = vld [vmem:[#allocation5 + $0x58] sm:$0xff]
        %v253 = vld [vmem:[#allocation5 + $0x60] sm:$0xff]
        %v254 = vld [vmem:[#allocation5 + $0x68] sm:$0xff]
        %v255 = vld [vmem:[#allocation5 + $0x70] sm:$0xff]
        %v256 = vld [vmem:[#allocation5 + $0x78] sm:$0xff]
        %257 = vmatprep.subr.mxu0 0.0
        %v258 = vand.u32 %v256, 4294901760
        %259 = vmatpush1.msra.mxu0 %v258
        %260 = vmatprep.subr.mxu0 0.0
        %v261 = vand.u32 %v255, 4294901760
        %262 = vmatpush1.msra.mxu0 %v261
        %263 = vmatprep.subr.mxu0 0.0
        %v264 = vand.u32 %v254, 4294901760
        %265 = vmatpush1.msra.mxu0 %v264
        %266 = vmatprep.subr.mxu0 0.0
        %v267 = vand.u32 %v253, 4294901760
        %268 = vmatpush1.msra.mxu0 %v267
        %269 = vmatprep.subr.mxu0 0.0
        %v270 = vand.u32 %v252, 4294901760
        %271 = vmatpush1.msra.mxu0 %v270
        %272 = vmatprep.subr.mxu0 0.0
        %v273 = vand.u32 %v251, 4294901760
        %274 = vmatpush1.msra.mxu0 %v273
        %275 = vmatprep.subr.mxu0 0.0
        %v276 = vand.u32 %v250, 4294901760
        %277 = vmatpush1.msra.mxu0 %v276
        %278 = vmatprep.subr.mxu0 0.0
        %v279 = vand.u32 %v249, 4294901760
        %280 = vmatpush1.msra.mxu0 %v279
        %281 = vmatprep.subr.mxu0 0.0
        %v282 = vand.u32 %v248, 4294901760
        %283 = vmatpush1.msra.mxu0 %v282
        %284 = vmatprep.subr.mxu0 0.0
        %v285 = vand.u32 %v247, 4294901760
        %286 = vmatpush1.msra.mxu0 %v285
        %287 = vmatprep.subr.mxu0 0.0
        %v288 = vand.u32 %v246, 4294901760
        %289 = vmatpush1.msra.mxu0 %v288
        %290 = vmatprep.subr.mxu0 0.0
        %v291 = vand.u32 %v245, 4294901760
        %292 = vmatpush1.msra.mxu0 %v291
        %293 = vmatprep.subr.mxu0 0.0
        %v294 = vand.u32 %v244, 4294901760
        %295 = vmatpush1.msra.mxu0 %v294
        %296 = vmatprep.subr.mxu0 0.0
        %v297 = vand.u32 %v243, 4294901760
        %298 = vmatpush1.msra.mxu0 %v297
        %299 = vmatprep.subr.mxu0 0.0
        %v300 = vand.u32 %v242, 4294901760
        %301 = vmatpush1.msra.mxu0 %v300
        %302 = vmatprep.subr.mxu0 0.0
        %v303 = vand.u32 %v241, 4294901760
        %304 = vmatpush1.msra.mxu0 %v303
        %305 = vmatprep.subr.mxu0 0.0
        %306 = vmatpush2.msra.mxu0 0.0
        %307 = vmatprep.subr.mxu0 0.0
        %308 = vmatpush2.msra.mxu0 0.0
        %309 = vmatprep.subr.mxu0 0.0
        %310 = vmatpush2.msra.mxu0 0.0
        %311 = vmatprep.subr.mxu0 0.0
        %312 = vmatpush2.msra.mxu0 0.0
        %313 = vmatprep.subr.mxu0 0.0
        %314 = vmatpush2.msra.mxu0 0.0
        %315 = vmatprep.subr.mxu0 0.0
        %316 = vmatpush2.msra.mxu0 0.0
        %317 = vmatprep.subr.mxu0 0.0
        %318 = vmatpush2.msra.mxu0 0.0
        %319 = vmatprep.subr.mxu0 0.0
        %320 = vmatpush2.msra.mxu0 0.0
        %321 = vmatprep.subr.mxu0 0.0
        %322 = vmatpush2.msra.mxu0 0.0
        %323 = vmatprep.subr.mxu0 0.0
        %324 = vmatpush2.msra.mxu0 0.0
        %325 = vmatprep.subr.mxu0 0.0
        %326 = vmatpush2.msra.mxu0 0.0
        %327 = vmatprep.subr.mxu0 0.0
        %328 = vmatpush2.msra.mxu0 0.0
        %329 = vmatprep.subr.mxu0 0.0
        %330 = vmatpush2.msra.mxu0 0.0
        %331 = vmatprep.subr.mxu0 0.0
        %332 = vmatpush2.msra.mxu0 0.0
        %333 = vmatprep.subr.mxu0 0.0
        %334 = vmatpush2.msra.mxu0 0.0
        %335 = vmatprep.subr.mxu0 0.0
        %336 = vmatpush2.msra.mxu0 0.0
        %337 = vmatprep.mubr.f32.mxu0 0.0
        %v338 = vand.u32 %v233, 4294901760
        %v339 = vsub.f32 %v233, %v338
        %v340 = vand.u32 %v339, 4294901760
        %v341 = vsub.f32 %v339, %v340
        %v342 = vand.u32 %v341, 4294901760
        %343 = vmatmul.mubr.f32.gmra.mxu0 %v342
        %v344 = vpop.f32.mrf.mxu0
        %v345 = vadd.f32 0.0, %v344
        %v346 = vpop.f32.mrf.mxu0
        %347 = vmatprep.mubr.f32.mxu0 0.0
        %v348 = vand.u32 %v234, 4294901760
        %v349 = vsub.f32 %v234, %v348
        %v350 = vand.u32 %v349, 4294901760
        %v351 = vsub.f32 %v349, %v350
        %v352 = vand.u32 %v351, 4294901760
        %353 = vmatmul.mubr.f32.gmra.mxu0 %v352
        %v354 = vpop.f32.mrf.mxu0
        %v355 = vadd.f32 0.0, %v354
        %v356 = vpop.f32.mrf.mxu0
        %357 = vmatprep.mubr.f32.mxu0 0.0
        %v358 = vand.u32 %v235, 4294901760
        %v359 = vsub.f32 %v235, %v358
        %v360 = vand.u32 %v359, 4294901760
        %v361 = vsub.f32 %v359, %v360
        %v362 = vand.u32 %v361, 4294901760
        %363 = vmatmul.mubr.f32.gmra.mxu0 %v362
        %v364 = vpop.f32.mrf.mxu0
        %v365 = vadd.f32 0.0, %v364
        %v366 = vpop.f32.mrf.mxu0
        %367 = vmatprep.mubr.f32.mxu0 0.0
        %v368 = vand.u32 %v236, 4294901760
        %v369 = vsub.f32 %v236, %v368
        %v370 = vand.u32 %v369, 4294901760
        %v371 = vsub.f32 %v369, %v370
        %v372 = vand.u32 %v371, 4294901760
        %373 = vmatmul.mubr.f32.gmra.mxu0 %v372
        %v374 = vpop.f32.mrf.mxu0
        %v375 = vadd.f32 0.0, %v374
        %v376 = vpop.f32.mrf.mxu0
        %377 = vmatprep.mubr.f32.mxu0 0.0
        %v378 = vand.u32 %v237, 4294901760
        %v379 = vsub.f32 %v237, %v378
        %v380 = vand.u32 %v379, 4294901760
        %v381 = vsub.f32 %v379, %v380
        %v382 = vand.u32 %v381, 4294901760
        %383 = vmatmul.mubr.f32.gmra.mxu0 %v382
        %v384 = vpop.f32.mrf.mxu0
        %v385 = vadd.f32 0.0, %v384
        %v386 = vpop.f32.mrf.mxu0
        %387 = vmatprep.mubr.f32.mxu0 0.0
        %v388 = vand.u32 %v238, 4294901760
        %v389 = vsub.f32 %v238, %v388
        %v390 = vand.u32 %v389, 4294901760
        %v391 = vsub.f32 %v389, %v390
        %v392 = vand.u32 %v391, 4294901760
        %393 = vmatmul.mubr.f32.gmra.mxu0 %v392
        %v394 = vpop.f32.mrf.mxu0
        %v395 = vadd.f32 0.0, %v394
        %v396 = vpop.f32.mrf.mxu0
        %397 = vmatprep.mubr.f32.mxu0 0.0
        %v398 = vand.u32 %v239, 4294901760
        %v399 = vsub.f32 %v239, %v398
        %v400 = vand.u32 %v399, 4294901760
        %v401 = vsub.f32 %v399, %v400
        %v402 = vand.u32 %v401, 4294901760
        %403 = vmatmul.mubr.f32.gmra.mxu0 %v402
        %v404 = vpop.f32.mrf.mxu0
        %v405 = vadd.f32 0.0, %v404
        %v406 = vpop.f32.mrf.mxu0
        %407 = vmatprep.mubr.f32.mxu0 0.0
        %v408 = vand.u32 %v240, 4294901760
        %v409 = vsub.f32 %v240, %v408
        %v410 = vand.u32 %v409, 4294901760
        %v411 = vsub.f32 %v409, %v410
        %v412 = vand.u32 %v411, 4294901760
        %413 = vmatmul.mubr.f32.gmra.mxu0 %v412
        %v414 = vpop.f32.mrf.mxu0
        %v415 = vadd.f32 0.0, %v414
        %v416 = vpop.f32.mrf.mxu0
        %417 = vdwg.mxu0
        %418 = vmatprep.subr.mxu0 0.0
        %v419 = vand.u32 %v256, 4294901760
        %v420 = vsub.f32 %v256, %v419
        %v421 = vand.u32 %v420, 4294901760
        %v422 = vsub.f32 %v420, %v421
        %v423 = vand.u32 %v422, 4294901760
        %424 = vmatpush1.msra.mxu0 %v423
        %425 = vmatprep.subr.mxu0 0.0
        %v426 = vand.u32 %v255, 4294901760
        %v427 = vsub.f32 %v255, %v426
        %v428 = vand.u32 %v427, 4294901760
        %v429 = vsub.f32 %v427, %v428
        %v430 = vand.u32 %v429, 4294901760
        %431 = vmatpush1.msra.mxu0 %v430
        %432 = vmatprep.subr.mxu0 0.0
        %v433 = vand.u32 %v254, 4294901760
        %v434 = vsub.f32 %v254, %v433
        %v435 = vand.u32 %v434, 4294901760
        %v436 = vsub.f32 %v434, %v435
        %v437 = vand.u32 %v436, 4294901760
        %438 = vmatpush1.msra.mxu0 %v437
        %439 = vmatprep.subr.mxu0 0.0
        %v440 = vand.u32 %v253, 4294901760
        %v441 = vsub.f32 %v253, %v440
        %v442 = vand.u32 %v441, 4294901760
        %v443 = vsub.f32 %v441, %v442
        %v444 = vand.u32 %v443, 4294901760
        %445 = vmatpush1.msra.mxu0 %v444
        %446 = vmatprep.subr.mxu0 0.0
        %v447 = vand.u32 %v252, 4294901760
        %v448 = vsub.f32 %v252, %v447
        %v449 = vand.u32 %v448, 4294901760
        %v450 = vsub.f32 %v448, %v449
        %v451 = vand.u32 %v450, 4294901760
        %452 = vmatpush1.msra.mxu0 %v451
        %453 = vmatprep.subr.mxu0 0.0
        %v454 = vand.u32 %v251, 4294901760
        %v455 = vsub.f32 %v251, %v454
        %v456 = vand.u32 %v455, 4294901760
        %v457 = vsub.f32 %v455, %v456
        %v458 = vand.u32 %v457, 4294901760
        %459 = vmatpush1.msra.mxu0 %v458
        %460 = vmatprep.subr.mxu0 0.0
        %v461 = vand.u32 %v250, 4294901760
        %v462 = vsub.f32 %v250, %v461
        %v463 = vand.u32 %v462, 4294901760
        %v464 = vsub.f32 %v462, %v463
        %v465 = vand.u32 %v464, 4294901760
        %466 = vmatpush1.msra.mxu0 %v465
        %467 = vmatprep.subr.mxu0 0.0
        %v468 = vand.u32 %v249, 4294901760
        %v469 = vsub.f32 %v249, %v468
        %v470 = vand.u32 %v469, 4294901760
        %v471 = vsub.f32 %v469, %v470
        %v472 = vand.u32 %v471, 4294901760
        %473 = vmatpush1.msra.mxu0 %v472
        %474 = vmatprep.subr.mxu0 0.0
        %v475 = vand.u32 %v248, 4294901760
        %v476 = vsub.f32 %v248, %v475
        %v477 = vand.u32 %v476, 4294901760
        %v478 = vsub.f32 %v476, %v477
        %v479 = vand.u32 %v478, 4294901760
        %480 = vmatpush1.msra.mxu0 %v479
        %481 = vmatprep.subr.mxu0 0.0
        %v482 = vand.u32 %v247, 4294901760
        %v483 = vsub.f32 %v247, %v482
        %v484 = vand.u32 %v483, 4294901760
        %v485 = vsub.f32 %v483, %v484
        %v486 = vand.u32 %v485, 4294901760
        %487 = vmatpush1.msra.mxu0 %v486
        %488 = vmatprep.subr.mxu0 0.0
        %v489 = vand.u32 %v246, 4294901760
        %v490 = vsub.f32 %v246, %v489
        %v491 = vand.u32 %v490, 4294901760
        %v492 = vsub.f32 %v490, %v491
        %v493 = vand.u32 %v492, 4294901760
        %494 = vmatpush1.msra.mxu0 %v493
        %495 = vmatprep.subr.mxu0 0.0
        %v496 = vand.u32 %v245, 4294901760
        %v497 = vsub.f32 %v245, %v496
        %v498 = vand.u32 %v497, 4294901760
        %v499 = vsub.f32 %v497, %v498
        %v500 = vand.u32 %v499, 4294901760
        %501 = vmatpush1.msra.mxu0 %v500
        %502 = vmatprep.subr.mxu0 0.0
        %v503 = vand.u32 %v244, 4294901760
        %v504 = vsub.f32 %v244, %v503
        %v505 = vand.u32 %v504, 4294901760
        %v506 = vsub.f32 %v504, %v505
        %v507 = vand.u32 %v506, 4294901760
        %508 = vmatpush1.msra.mxu0 %v507
        %509 = vmatprep.subr.mxu0 0.0
        %v510 = vand.u32 %v243, 4294901760
        %v511 = vsub.f32 %v243, %v510
        %v512 = vand.u32 %v511, 4294901760
        %v513 = vsub.f32 %v511, %v512
        %v514 = vand.u32 %v513, 4294901760
        %515 = vmatpush1.msra.mxu0 %v514
        %516 = vmatprep.subr.mxu0 0.0
        %v517 = vand.u32 %v242, 4294901760
        %v518 = vsub.f32 %v242, %v517
        %v519 = vand.u32 %v518, 4294901760
        %v520 = vsub.f32 %v518, %v519
        %v521 = vand.u32 %v520, 4294901760
        %522 = vmatpush1.msra.mxu0 %v521
        %523 = vmatprep.subr.mxu0 0.0
        %v524 = vand.u32 %v241, 4294901760
        %v525 = vsub.f32 %v241, %v524
        %v526 = vand.u32 %v525, 4294901760
        %v527 = vsub.f32 %v525, %v526
        %v528 = vand.u32 %v527, 4294901760
        %529 = vmatpush1.msra.mxu0 %v528
        %530 = vmatprep.subr.mxu0 0.0
        %531 = vmatpush2.msra.mxu0 0.0
        %532 = vmatprep.subr.mxu0 0.0
        %533 = vmatpush2.msra.mxu0 0.0
        %534 = vmatprep.subr.mxu0 0.0
        %535 = vmatpush2.msra.mxu0 0.0
        %536 = vmatprep.subr.mxu0 0.0
        %537 = vmatpush2.msra.mxu0 0.0
        %538 = vmatprep.subr.mxu0 0.0
        %539 = vmatpush2.msra.mxu0 0.0
        %540 = vmatprep.subr.mxu0 0.0
        %541 = vmatpush2.msra.mxu0 0.0
        %542 = vmatprep.subr.mxu0 0.0
        %543 = vmatpush2.msra.mxu0 0.0
        %544 = vmatprep.subr.mxu0 0.0
        %545 = vmatpush2.msra.mxu0 0.0
        %546 = vmatprep.subr.mxu0 0.0
        %547 = vmatpush2.msra.mxu0 0.0
        %548 = vmatprep.subr.mxu0 0.0
        %549 = vmatpush2.msra.mxu0 0.0
        %550 = vmatprep.subr.mxu0 0.0
        %551 = vmatpush2.msra.mxu0 0.0
        %552 = vmatprep.subr.mxu0 0.0
        %553 = vmatpush2.msra.mxu0 0.0
        %554 = vmatprep.subr.mxu0 0.0
        %555 = vmatpush2.msra.mxu0 0.0
        %556 = vmatprep.subr.mxu0 0.0
        %557 = vmatpush2.msra.mxu0 0.0
        %558 = vmatprep.subr.mxu0 0.0
        %559 = vmatpush2.msra.mxu0 0.0
        %560 = vmatprep.subr.mxu0 0.0
        %561 = vmatpush2.msra.mxu0 0.0
        %562 = vmatprep.mubr.f32.mxu0 0.0
        %v563 = vand.u32 %v233, 4294901760
        %564 = vmatmul.mubr.f32.gmra.mxu0 %v563
        %v565 = vpop.f32.mrf.mxu0
        %v566 = vadd.f32 %v345, %v565
        %v567 = vpop.f32.mrf.mxu0
        %568 = vmatprep.mubr.f32.mxu0 0.0
        %v569 = vand.u32 %v234, 4294901760
        %570 = vmatmul.mubr.f32.gmra.mxu0 %v569
        %v571 = vpop.f32.mrf.mxu0
        %v572 = vadd.f32 %v355, %v571
        %v573 = vpop.f32.mrf.mxu0
        %574 = vmatprep.mubr.f32.mxu0 0.0
        %v575 = vand.u32 %v235, 4294901760
        %576 = vmatmul.mubr.f32.gmra.mxu0 %v575
        %v577 = vpop.f32.mrf.mxu0
        %v578 = vadd.f32 %v365, %v577
        %v579 = vpop.f32.mrf.mxu0
        %580 = vmatprep.mubr.f32.mxu0 0.0
        %v581 = vand.u32 %v236, 4294901760
        %582 = vmatmul.mubr.f32.gmra.mxu0 %v581
        %v583 = vpop.f32.mrf.mxu0
        %v584 = vadd.f32 %v375, %v583
        %v585 = vpop.f32.mrf.mxu0
        %586 = vmatprep.mubr.f32.mxu0 0.0
        %v587 = vand.u32 %v237, 4294901760
        %588 = vmatmul.mubr.f32.gmra.mxu0 %v587
        %v589 = vpop.f32.mrf.mxu0
        %v590 = vadd.f32 %v385, %v589
        %v591 = vpop.f32.mrf.mxu0
        %592 = vmatprep.mubr.f32.mxu0 0.0
        %v593 = vand.u32 %v238, 4294901760
        %594 = vmatmul.mubr.f32.gmra.mxu0 %v593
        %v595 = vpop.f32.mrf.mxu0
        %v596 = vadd.f32 %v395, %v595
        %v597 = vpop.f32.mrf.mxu0
        %598 = vmatprep.mubr.f32.mxu0 0.0
        %v599 = vand.u32 %v239, 4294901760
        %600 = vmatmul.mubr.f32.gmra.mxu0 %v599
        %v601 = vpop.f32.mrf.mxu0
        %v602 = vadd.f32 %v405, %v601
        %v603 = vpop.f32.mrf.mxu0
        %604 = vmatprep.mubr.f32.mxu0 0.0
        %v605 = vand.u32 %v240, 4294901760
        %606 = vmatmul.mubr.f32.gmra.mxu0 %v605
        %v607 = vpop.f32.mrf.mxu0
        %v608 = vadd.f32 %v415, %v607
        %v609 = vpop.f32.mrf.mxu0
        %610 = vdwg.mxu0
        %611 = vmatprep.subr.mxu0 0.0
        %v612 = vand.u32 %v256, 4294901760
        %v613 = vsub.f32 %v256, %v612
        %614 = vmatpush1.msra.mxu0 %v613
        %615 = vmatprep.subr.mxu0 0.0
        %v616 = vand.u32 %v255, 4294901760
        %v617 = vsub.f32 %v255, %v616
        %618 = vmatpush1.msra.mxu0 %v617
        %619 = vmatprep.subr.mxu0 0.0
        %v620 = vand.u32 %v254, 4294901760
        %v621 = vsub.f32 %v254, %v620
        %622 = vmatpush1.msra.mxu0 %v621
        %623 = vmatprep.subr.mxu0 0.0
        %v624 = vand.u32 %v253, 4294901760
        %v625 = vsub.f32 %v253, %v624
        %626 = vmatpush1.msra.mxu0 %v625
        %627 = vmatprep.subr.mxu0 0.0
        %v628 = vand.u32 %v252, 4294901760
        %v629 = vsub.f32 %v252, %v628
        %630 = vmatpush1.msra.mxu0 %v629
        %631 = vmatprep.subr.mxu0 0.0
        %v632 = vand.u32 %v251, 4294901760
        %v633 = vsub.f32 %v251, %v632
        %634 = vmatpush1.msra.mxu0 %v633
        %635 = vmatprep.subr.mxu0 0.0
        %v636 = vand.u32 %v250, 4294901760
        %v637 = vsub.f32 %v250, %v636
        %638 = vmatpush1.msra.mxu0 %v637
        %639 = vmatprep.subr.mxu0 0.0
        %v640 = vand.u32 %v249, 4294901760
        %v641 = vsub.f32 %v249, %v640
        %642 = vmatpush1.msra.mxu0 %v641
        %643 = vmatprep.subr.mxu0 0.0
        %v644 = vand.u32 %v248, 4294901760
        %v645 = vsub.f32 %v248, %v644
        %646 = vmatpush1.msra.mxu0 %v645
        %647 = vmatprep.subr.mxu0 0.0
        %v648 = vand.u32 %v247, 4294901760
        %v649 = vsub.f32 %v247, %v648
        %650 = vmatpush1.msra.mxu0 %v649
        %651 = vmatprep.subr.mxu0 0.0
        %v652 = vand.u32 %v246, 4294901760
        %v653 = vsub.f32 %v246, %v652
        %654 = vmatpush1.msra.mxu0 %v653
        %655 = vmatprep.subr.mxu0 0.0
        %v656 = vand.u32 %v245, 4294901760
        %v657 = vsub.f32 %v245, %v656
        %658 = vmatpush1.msra.mxu0 %v657
        %659 = vmatprep.subr.mxu0 0.0
        %v660 = vand.u32 %v244, 4294901760
        %v661 = vsub.f32 %v244, %v660
        %662 = vmatpush1.msra.mxu0 %v661
        %663 = vmatprep.subr.mxu0 0.0
        %v664 = vand.u32 %v243, 4294901760
        %v665 = vsub.f32 %v243, %v664
        %666 = vmatpush1.msra.mxu0 %v665
        %667 = vmatprep.subr.mxu0 0.0
        %v668 = vand.u32 %v242, 4294901760
        %v669 = vsub.f32 %v242, %v668
        %670 = vmatpush1.msra.mxu0 %v669
        %671 = vmatprep.subr.mxu0 0.0
        %v672 = vand.u32 %v241, 4294901760
        %v673 = vsub.f32 %v241, %v672
        %674 = vmatpush1.msra.mxu0 %v673
        %675 = vmatprep.subr.mxu0 0.0
        %676 = vmatpush2.msra.mxu0 0.0
        %677 = vmatprep.subr.mxu0 0.0
        %678 = vmatpush2.msra.mxu0 0.0
        %679 = vmatprep.subr.mxu0 0.0
        %680 = vmatpush2.msra.mxu0 0.0
        %681 = vmatprep.subr.mxu0 0.0
        %682 = vmatpush2.msra.mxu0 0.0
        %683 = vmatprep.subr.mxu0 0.0
        %684 = vmatpush2.msra.mxu0 0.0
        %685 = vmatprep.subr.mxu0 0.0
        %686 = vmatpush2.msra.mxu0 0.0
        %687 = vmatprep.subr.mxu0 0.0
        %688 = vmatpush2.msra.mxu0 0.0
        %689 = vmatprep.subr.mxu0 0.0
        %690 = vmatpush2.msra.mxu0 0.0
        %691 = vmatprep.subr.mxu0 0.0
        %692 = vmatpush2.msra.mxu0 0.0
        %693 = vmatprep.subr.mxu0 0.0
        %694 = vmatpush2.msra.mxu0 0.0
        %695 = vmatprep.subr.mxu0 0.0
        %696 = vmatpush2.msra.mxu0 0.0
        %697 = vmatprep.subr.mxu0 0.0
        %698 = vmatpush2.msra.mxu0 0.0
        %699 = vmatprep.subr.mxu0 0.0
        %700 = vmatpush2.msra.mxu0 0.0
        %701 = vmatprep.subr.mxu0 0.0
        %702 = vmatpush2.msra.mxu0 0.0
        %703 = vmatprep.subr.mxu0 0.0
        %704 = vmatpush2.msra.mxu0 0.0
        %705 = vmatprep.subr.mxu0 0.0
        %706 = vmatpush2.msra.mxu0 0.0
        %707 = vmatprep.mubr.f32.mxu0 0.0
        %v708 = vand.u32 %v233, 4294901760
        %v709 = vsub.f32 %v233, %v708
        %710 = vmatmul.mubr.f32.gmra.mxu0 %v709
        %v711 = vpop.f32.mrf.mxu0
        %v712 = vadd.f32 %v566, %v711
        %v713 = vpop.f32.mrf.mxu0
        %714 = vmatprep.mubr.f32.mxu0 0.0
        %v715 = vand.u32 %v234, 4294901760
        %v716 = vsub.f32 %v234, %v715
        %717 = vmatmul.mubr.f32.gmra.mxu0 %v716
        %v718 = vpop.f32.mrf.mxu0
        %v719 = vadd.f32 %v572, %v718
        %v720 = vpop.f32.mrf.mxu0
        %721 = vmatprep.mubr.f32.mxu0 0.0
        %v722 = vand.u32 %v235, 4294901760
        %v723 = vsub.f32 %v235, %v722
        %724 = vmatmul.mubr.f32.gmra.mxu0 %v723
        %v725 = vpop.f32.mrf.mxu0
        %v726 = vadd.f32 %v578, %v725
        %v727 = vpop.f32.mrf.mxu0
        %728 = vmatprep.mubr.f32.mxu0 0.0
        %v729 = vand.u32 %v236, 4294901760
        %v730 = vsub.f32 %v236, %v729
        %731 = vmatmul.mubr.f32.gmra.mxu0 %v730
        %v732 = vpop.f32.mrf.mxu0
        %v733 = vadd.f32 %v584, %v732
        %v734 = vpop.f32.mrf.mxu0
        %735 = vmatprep.mubr.f32.mxu0 0.0
        %v736 = vand.u32 %v237, 4294901760
        %v737 = vsub.f32 %v237, %v736
        %738 = vmatmul.mubr.f32.gmra.mxu0 %v737
        %v739 = vpop.f32.mrf.mxu0
        %v740 = vadd.f32 %v590, %v739
        %v741 = vpop.f32.mrf.mxu0
        %742 = vmatprep.mubr.f32.mxu0 0.0
        %v743 = vand.u32 %v238, 4294901760
        %v744 = vsub.f32 %v238, %v743
        %745 = vmatmul.mubr.f32.gmra.mxu0 %v744
        %v746 = vpop.f32.mrf.mxu0
        %v747 = vadd.f32 %v596, %v746
        %v748 = vpop.f32.mrf.mxu0
        %749 = vmatprep.mubr.f32.mxu0 0.0
        %v750 = vand.u32 %v239, 4294901760
        %v751 = vsub.f32 %v239, %v750
        %752 = vmatmul.mubr.f32.gmra.mxu0 %v751
        %v753 = vpop.f32.mrf.mxu0
        %v754 = vadd.f32 %v602, %v753
        %v755 = vpop.f32.mrf.mxu0
        %756 = vmatprep.mubr.f32.mxu0 0.0
        %v757 = vand.u32 %v240, 4294901760
        %v758 = vsub.f32 %v240, %v757
        %759 = vmatmul.mubr.f32.gmra.mxu0 %v758
        %v760 = vpop.f32.mrf.mxu0
        %v761 = vadd.f32 %v608, %v760
        %v762 = vpop.f32.mrf.mxu0
        %763 = vdwg.mxu0
        %764 = vmatprep.subr.mxu0 0.0
        %v765 = vand.u32 %v256, 4294901760
        %766 = vmatpush1.msra.mxu0 %v765
        %767 = vmatprep.subr.mxu0 0.0
        %v768 = vand.u32 %v255, 4294901760
        %769 = vmatpush1.msra.mxu0 %v768
        %770 = vmatprep.subr.mxu0 0.0
        %v771 = vand.u32 %v254, 4294901760
        %772 = vmatpush1.msra.mxu0 %v771
        %773 = vmatprep.subr.mxu0 0.0
        %v774 = vand.u32 %v253, 4294901760
        %775 = vmatpush1.msra.mxu0 %v774
        %776 = vmatprep.subr.mxu0 0.0
        %v777 = vand.u32 %v252, 4294901760
        %778 = vmatpush1.msra.mxu0 %v777
        %779 = vmatprep.subr.mxu0 0.0
        %v780 = vand.u32 %v251, 4294901760
        %781 = vmatpush1.msra.mxu0 %v780
        %782 = vmatprep.subr.mxu0 0.0
        %v783 = vand.u32 %v250, 4294901760
        %784 = vmatpush1.msra.mxu0 %v783
        %785 = vmatprep.subr.mxu0 0.0
        %v786 = vand.u32 %v249, 4294901760
        %787 = vmatpush1.msra.mxu0 %v786
        %788 = vmatprep.subr.mxu0 0.0
        %v789 = vand.u32 %v248, 4294901760
        %790 = vmatpush1.msra.mxu0 %v789
        %791 = vmatprep.subr.mxu0 0.0
        %v792 = vand.u32 %v247, 4294901760
        %793 = vmatpush1.msra.mxu0 %v792
        %794 = vmatprep.subr.mxu0 0.0
        %v795 = vand.u32 %v246, 4294901760
        %796 = vmatpush1.msra.mxu0 %v795
        %797 = vmatprep.subr.mxu0 0.0
        %v798 = vand.u32 %v245, 4294901760
        %799 = vmatpush1.msra.mxu0 %v798
        %800 = vmatprep.subr.mxu0 0.0
        %v801 = vand.u32 %v244, 4294901760
        %802 = vmatpush1.msra.mxu0 %v801
        %803 = vmatprep.subr.mxu0 0.0
        %v804 = vand.u32 %v243, 4294901760
        %805 = vmatpush1.msra.mxu0 %v804
        %806 = vmatprep.subr.mxu0 0.0
        %v807 = vand.u32 %v242, 4294901760
        %808 = vmatpush1.msra.mxu0 %v807
        %809 = vmatprep.subr.mxu0 0.0
        %v810 = vand.u32 %v241, 4294901760
        %811 = vmatpush1.msra.mxu0 %v810
        %812 = vmatprep.subr.mxu0 0.0
        %813 = vmatpush2.msra.mxu0 0.0
        %814 = vmatprep.subr.mxu0 0.0
        %815 = vmatpush2.msra.mxu0 0.0
        %816 = vmatprep.subr.mxu0 0.0
        %817 = vmatpush2.msra.mxu0 0.0
        %818 = vmatprep.subr.mxu0 0.0
        %819 = vmatpush2.msra.mxu0 0.0
        %820 = vmatprep.subr.mxu0 0.0
        %821 = vmatpush2.msra.mxu0 0.0
        %822 = vmatprep.subr.mxu0 0.0
        %823 = vmatpush2.msra.mxu0 0.0
        %824 = vmatprep.subr.mxu0 0.0
        %825 = vmatpush2.msra.mxu0 0.0
        %826 = vmatprep.subr.mxu0 0.0
        %827 = vmatpush2.msra.mxu0 0.0
        %828 = vmatprep.subr.mxu0 0.0
        %829 = vmatpush2.msra.mxu0 0.0
        %830 = vmatprep.subr.mxu0 0.0
        %831 = vmatpush2.msra.mxu0 0.0
        %832 = vmatprep.subr.mxu0 0.0
        %833 = vmatpush2.msra.mxu0 0.0
        %834 = vmatprep.subr.mxu0 0.0
        %835 = vmatpush2.msra.mxu0 0.0
        %836 = vmatprep.subr.mxu0 0.0
        %837 = vmatpush2.msra.mxu0 0.0
        %838 = vmatprep.subr.mxu0 0.0
        %839 = vmatpush2.msra.mxu0 0.0
        %840 = vmatprep.subr.mxu0 0.0
        %841 = vmatpush2.msra.mxu0 0.0
        %842 = vmatprep.subr.mxu0 0.0
        %843 = vmatpush2.msra.mxu0 0.0
        %844 = vmatprep.mubr.f32.mxu0 0.0
        %v845 = vand.u32 %v233, 4294901760
        %v846 = vsub.f32 %v233, %v845
        %v847 = vand.u32 %v846, 4294901760
        %848 = vmatmul.mubr.f32.gmra.mxu0 %v847
        %v849 = vpop.f32.mrf.mxu0
        %v850 = vadd.f32 %v712, %v849
        %v851 = vpop.f32.mrf.mxu0
        %852 = vmatprep.mubr.f32.mxu0 0.0
        %v853 = vand.u32 %v234, 4294901760
        %v854 = vsub.f32 %v234, %v853
        %v855 = vand.u32 %v854, 4294901760
        %856 = vmatmul.mubr.f32.gmra.mxu0 %v855
        %v857 = vpop.f32.mrf.mxu0
        %v858 = vadd.f32 %v719, %v857
        %v859 = vpop.f32.mrf.mxu0
        %860 = vmatprep.mubr.f32.mxu0 0.0
        %v861 = vand.u32 %v235, 4294901760
        %v862 = vsub.f32 %v235, %v861
        %v863 = vand.u32 %v862, 4294901760
        %864 = vmatmul.mubr.f32.gmra.mxu0 %v863
        %v865 = vpop.f32.mrf.mxu0
        %v866 = vadd.f32 %v726, %v865
        %v867 = vpop.f32.mrf.mxu0
        %868 = vmatprep.mubr.f32.mxu0 0.0
        %v869 = vand.u32 %v236, 4294901760
        %v870 = vsub.f32 %v236, %v869
        %v871 = vand.u32 %v870, 4294901760
        %872 = vmatmul.mubr.f32.gmra.mxu0 %v871
        %v873 = vpop.f32.mrf.mxu0
        %v874 = vadd.f32 %v733, %v873
        %v875 = vpop.f32.mrf.mxu0
        %876 = vmatprep.mubr.f32.mxu0 0.0
        %v877 = vand.u32 %v237, 4294901760
        %v878 = vsub.f32 %v237, %v877
        %v879 = vand.u32 %v878, 4294901760
        %880 = vmatmul.mubr.f32.gmra.mxu0 %v879
        %v881 = vpop.f32.mrf.mxu0
        %v882 = vadd.f32 %v740, %v881
        %v883 = vpop.f32.mrf.mxu0
        %884 = vmatprep.mubr.f32.mxu0 0.0
        %v885 = vand.u32 %v238, 4294901760
        %v886 = vsub.f32 %v238, %v885
        %v887 = vand.u32 %v886, 4294901760
        %888 = vmatmul.mubr.f32.gmra.mxu0 %v887
        %v889 = vpop.f32.mrf.mxu0
        %v890 = vadd.f32 %v747, %v889
        %v891 = vpop.f32.mrf.mxu0
        %892 = vmatprep.mubr.f32.mxu0 0.0
        %v893 = vand.u32 %v239, 4294901760
        %v894 = vsub.f32 %v239, %v893
        %v895 = vand.u32 %v894, 4294901760
        %896 = vmatmul.mubr.f32.gmra.mxu0 %v895
        %v897 = vpop.f32.mrf.mxu0
        %v898 = vadd.f32 %v754, %v897
        %v899 = vpop.f32.mrf.mxu0
        %900 = vmatprep.mubr.f32.mxu0 0.0
        %v901 = vand.u32 %v240, 4294901760
        %v902 = vsub.f32 %v240, %v901
        %v903 = vand.u32 %v902, 4294901760
        %904 = vmatmul.mubr.f32.gmra.mxu0 %v903
        %v905 = vpop.f32.mrf.mxu0
        %v906 = vadd.f32 %v761, %v905
        %v907 = vpop.f32.mrf.mxu0
        %908 = vdwg.mxu0
        %909 = vmatprep.subr.mxu0 0.0
        %v910 = vand.u32 %v256, 4294901760
        %v911 = vsub.f32 %v256, %v910
        %v912 = vand.u32 %v911, 4294901760
        %913 = vmatpush1.msra.mxu0 %v912
        %914 = vmatprep.subr.mxu0 0.0
        %v915 = vand.u32 %v255, 4294901760
        %v916 = vsub.f32 %v255, %v915
        %v917 = vand.u32 %v916, 4294901760
        %918 = vmatpush1.msra.mxu0 %v917
        %919 = vmatprep.subr.mxu0 0.0
        %v920 = vand.u32 %v254, 4294901760
        %v921 = vsub.f32 %v254, %v920
        %v922 = vand.u32 %v921, 4294901760
        %923 = vmatpush1.msra.mxu0 %v922
        %924 = vmatprep.subr.mxu0 0.0
        %v925 = vand.u32 %v253, 4294901760
        %v926 = vsub.f32 %v253, %v925
        %v927 = vand.u32 %v926, 4294901760
        %928 = vmatpush1.msra.mxu0 %v927
        %929 = vmatprep.subr.mxu0 0.0
        %v930 = vand.u32 %v252, 4294901760
        %v931 = vsub.f32 %v252, %v930
        %v932 = vand.u32 %v931, 4294901760
        %933 = vmatpush1.msra.mxu0 %v932
        %934 = vmatprep.subr.mxu0 0.0
        %v935 = vand.u32 %v251, 4294901760
        %v936 = vsub.f32 %v251, %v935
        %v937 = vand.u32 %v936, 4294901760
        %938 = vmatpush1.msra.mxu0 %v937
        %939 = vmatprep.subr.mxu0 0.0
        %v940 = vand.u32 %v250, 4294901760
        %v941 = vsub.f32 %v250, %v940
        %v942 = vand.u32 %v941, 4294901760
        %943 = vmatpush1.msra.mxu0 %v942
        %944 = vmatprep.subr.mxu0 0.0
        %v945 = vand.u32 %v249, 4294901760
        %v946 = vsub.f32 %v249, %v945
        %v947 = vand.u32 %v946, 4294901760
        %948 = vmatpush1.msra.mxu0 %v947
        %949 = vmatprep.subr.mxu0 0.0
        %v950 = vand.u32 %v248, 4294901760
        %v951 = vsub.f32 %v248, %v950
        %v952 = vand.u32 %v951, 4294901760
        %953 = vmatpush1.msra.mxu0 %v952
        %954 = vmatprep.subr.mxu0 0.0
        %v955 = vand.u32 %v247, 4294901760
        %v956 = vsub.f32 %v247, %v955
        %v957 = vand.u32 %v956, 4294901760
        %958 = vmatpush1.msra.mxu0 %v957
        %959 = vmatprep.subr.mxu0 0.0
        %v960 = vand.u32 %v246, 4294901760
        %v961 = vsub.f32 %v246, %v960
        %v962 = vand.u32 %v961, 4294901760
        %963 = vmatpush1.msra.mxu0 %v962
        %964 = vmatprep.subr.mxu0 0.0
        %v965 = vand.u32 %v245, 4294901760
        %v966 = vsub.f32 %v245, %v965
        %v967 = vand.u32 %v966, 4294901760
        %968 = vmatpush1.msra.mxu0 %v967
        %969 = vmatprep.subr.mxu0 0.0
        %v970 = vand.u32 %v244, 4294901760
        %v971 = vsub.f32 %v244, %v970
        %v972 = vand.u32 %v971, 4294901760
        %973 = vmatpush1.msra.mxu0 %v972
        %974 = vmatprep.subr.mxu0 0.0
        %v975 = vand.u32 %v243, 4294901760
        %v976 = vsub.f32 %v243, %v975
        %v977 = vand.u32 %v976, 4294901760
        %978 = vmatpush1.msra.mxu0 %v977
        %979 = vmatprep.subr.mxu0 0.0
        %v980 = vand.u32 %v242, 4294901760
        %v981 = vsub.f32 %v242, %v980
        %v982 = vand.u32 %v981, 4294901760
        %983 = vmatpush1.msra.mxu0 %v982
        %984 = vmatprep.subr.mxu0 0.0
        %v985 = vand.u32 %v241, 4294901760
        %v986 = vsub.f32 %v241, %v985
        %v987 = vand.u32 %v986, 4294901760
        %988 = vmatpush1.msra.mxu0 %v987
        %989 = vmatprep.subr.mxu0 0.0
        %990 = vmatpush2.msra.mxu0 0.0
        %991 = vmatprep.subr.mxu0 0.0
        %992 = vmatpush2.msra.mxu0 0.0
        %993 = vmatprep.subr.mxu0 0.0
        %994 = vmatpush2.msra.mxu0 0.0
        %995 = vmatprep.subr.mxu0 0.0
        %996 = vmatpush2.msra.mxu0 0.0
        %997 = vmatprep.subr.mxu0 0.0
        %998 = vmatpush2.msra.mxu0 0.0
        %999 = vmatprep.subr.mxu0 0.0
        %1000 = vmatpush2.msra.mxu0 0.0
        %1001 = vmatprep.subr.mxu0 0.0
        %1002 = vmatpush2.msra.mxu0 0.0
        %1003 = vmatprep.subr.mxu0 0.0
        %1004 = vmatpush2.msra.mxu0 0.0
        %1005 = vmatprep.subr.mxu0 0.0
        %1006 = vmatpush2.msra.mxu0 0.0
        %1007 = vmatprep.subr.mxu0 0.0
        %1008 = vmatpush2.msra.mxu0 0.0
        %1009 = vmatprep.subr.mxu0 0.0
        %1010 = vmatpush2.msra.mxu0 0.0
        %1011 = vmatprep.subr.mxu0 0.0
        %1012 = vmatpush2.msra.mxu0 0.0
        %1013 = vmatprep.subr.mxu0 0.0
        %1014 = vmatpush2.msra.mxu0 0.0
        %1015 = vmatprep.subr.mxu0 0.0
        %1016 = vmatpush2.msra.mxu0 0.0
        %1017 = vmatprep.subr.mxu0 0.0
        %1018 = vmatpush2.msra.mxu0 0.0
        %1019 = vmatprep.subr.mxu0 0.0
        %1020 = vmatpush2.msra.mxu0 0.0
        %1021 = vmatprep.mubr.f32.mxu0 0.0
        %v1022 = vand.u32 %v233, 4294901760
        %1023 = vmatmul.mubr.f32.gmra.mxu0 %v1022
        %v1024 = vpop.f32.mrf.mxu0
        %v1025 = vadd.f32 %v850, %v1024
        %v1026 = vpop.f32.mrf.mxu0
        %1027 = vmatprep.mubr.f32.mxu0 0.0
        %v1028 = vand.u32 %v234, 4294901760
        %1029 = vmatmul.mubr.f32.gmra.mxu0 %v1028
        %v1030 = vpop.f32.mrf.mxu0
        %v1031 = vadd.f32 %v858, %v1030
        %v1032 = vpop.f32.mrf.mxu0
        %1033 = vmatprep.mubr.f32.mxu0 0.0
        %v1034 = vand.u32 %v235, 4294901760
        %1035 = vmatmul.mubr.f32.gmra.mxu0 %v1034
        %v1036 = vpop.f32.mrf.mxu0
        %v1037 = vadd.f32 %v866, %v1036
        %v1038 = vpop.f32.mrf.mxu0
        %1039 = vmatprep.mubr.f32.mxu0 0.0
        %v1040 = vand.u32 %v236, 4294901760
        %1041 = vmatmul.mubr.f32.gmra.mxu0 %v1040
        %v1042 = vpop.f32.mrf.mxu0
        %v1043 = vadd.f32 %v874, %v1042
        %v1044 = vpop.f32.mrf.mxu0
        %1045 = vmatprep.mubr.f32.mxu0 0.0
        %v1046 = vand.u32 %v237, 4294901760
        %1047 = vmatmul.mubr.f32.gmra.mxu0 %v1046
        %v1048 = vpop.f32.mrf.mxu0
        %v1049 = vadd.f32 %v882, %v1048
        %v1050 = vpop.f32.mrf.mxu0
        %1051 = vmatprep.mubr.f32.mxu0 0.0
        %v1052 = vand.u32 %v238, 4294901760
        %1053 = vmatmul.mubr.f32.gmra.mxu0 %v1052
        %v1054 = vpop.f32.mrf.mxu0
        %v1055 = vadd.f32 %v890, %v1054
        %v1056 = vpop.f32.mrf.mxu0
        %1057 = vmatprep.mubr.f32.mxu0 0.0
        %v1058 = vand.u32 %v239, 4294901760
        %1059 = vmatmul.mubr.f32.gmra.mxu0 %v1058
        %v1060 = vpop.f32.mrf.mxu0
        %v1061 = vadd.f32 %v898, %v1060
        %v1062 = vpop.f32.mrf.mxu0
        %1063 = vmatprep.mubr.f32.mxu0 0.0
        %v1064 = vand.u32 %v240, 4294901760
        %1065 = vmatmul.mubr.f32.gmra.mxu0 %v1064
        %v1066 = vpop.f32.mrf.mxu0
        %v1067 = vadd.f32 %v906, %v1066
        %v1068 = vpop.f32.mrf.mxu0
        %1069 = vdwg.mxu0
        %1070 = vmatprep.subr.mxu0 0.0
        %v1071 = vand.u32 %v256, 4294901760
        %1072 = vmatpush1.msra.mxu0 %v1071
        %1073 = vmatprep.subr.mxu0 0.0
        %v1074 = vand.u32 %v255, 4294901760
        %1075 = vmatpush1.msra.mxu0 %v1074
        %1076 = vmatprep.subr.mxu0 0.0
        %v1077 = vand.u32 %v254, 4294901760
        %1078 = vmatpush1.msra.mxu0 %v1077
        %1079 = vmatprep.subr.mxu0 0.0
        %v1080 = vand.u32 %v253, 4294901760
        %1081 = vmatpush1.msra.mxu0 %v1080
        %1082 = vmatprep.subr.mxu0 0.0
        %v1083 = vand.u32 %v252, 4294901760
        %1084 = vmatpush1.msra.mxu0 %v1083
        %1085 = vmatprep.subr.mxu0 0.0
        %v1086 = vand.u32 %v251, 4294901760
        %1087 = vmatpush1.msra.mxu0 %v1086
        %1088 = vmatprep.subr.mxu0 0.0
        %v1089 = vand.u32 %v250, 4294901760
        %1090 = vmatpush1.msra.mxu0 %v1089
        %1091 = vmatprep.subr.mxu0 0.0
        %v1092 = vand.u32 %v249, 4294901760
        %1093 = vmatpush1.msra.mxu0 %v1092
        %1094 = vmatprep.subr.mxu0 0.0
        %v1095 = vand.u32 %v248, 4294901760
        %1096 = vmatpush1.msra.mxu0 %v1095
        %1097 = vmatprep.subr.mxu0 0.0
        %v1098 = vand.u32 %v247, 4294901760
        %1099 = vmatpush1.msra.mxu0 %v1098
        %1100 = vmatprep.subr.mxu0 0.0
        %v1101 = vand.u32 %v246, 4294901760
        %1102 = vmatpush1.msra.mxu0 %v1101
        %1103 = vmatprep.subr.mxu0 0.0
        %v1104 = vand.u32 %v245, 4294901760
        %1105 = vmatpush1.msra.mxu0 %v1104
        %1106 = vmatprep.subr.mxu0 0.0
        %v1107 = vand.u32 %v244, 4294901760
        %1108 = vmatpush1.msra.mxu0 %v1107
        %1109 = vmatprep.subr.mxu0 0.0
        %v1110 = vand.u32 %v243, 4294901760
        %1111 = vmatpush1.msra.mxu0 %v1110
        %1112 = vmatprep.subr.mxu0 0.0
        %v1113 = vand.u32 %v242, 4294901760
        %1114 = vmatpush1.msra.mxu0 %v1113
        %1115 = vmatprep.subr.mxu0 0.0
        %v1116 = vand.u32 %v241, 4294901760
        %1117 = vmatpush1.msra.mxu0 %v1116
        %1118 = vmatprep.subr.mxu0 0.0
        %1119 = vmatpush2.msra.mxu0 0.0
        %1120 = vmatprep.subr.mxu0 0.0
        %1121 = vmatpush2.msra.mxu0 0.0
        %1122 = vmatprep.subr.mxu0 0.0
        %1123 = vmatpush2.msra.mxu0 0.0
        %1124 = vmatprep.subr.mxu0 0.0
        %1125 = vmatpush2.msra.mxu0 0.0
        %1126 = vmatprep.subr.mxu0 0.0
        %1127 = vmatpush2.msra.mxu0 0.0
        %1128 = vmatprep.subr.mxu0 0.0
        %1129 = vmatpush2.msra.mxu0 0.0
        %1130 = vmatprep.subr.mxu0 0.0
        %1131 = vmatpush2.msra.mxu0 0.0
        %1132 = vmatprep.subr.mxu0 0.0
        %1133 = vmatpush2.msra.mxu0 0.0
        %1134 = vmatprep.subr.mxu0 0.0
        %1135 = vmatpush2.msra.mxu0 0.0
        %1136 = vmatprep.subr.mxu0 0.0
        %1137 = vmatpush2.msra.mxu0 0.0
        %1138 = vmatprep.subr.mxu0 0.0
        %1139 = vmatpush2.msra.mxu0 0.0
        %1140 = vmatprep.subr.mxu0 0.0
        %1141 = vmatpush2.msra.mxu0 0.0
        %1142 = vmatprep.subr.mxu0 0.0
        %1143 = vmatpush2.msra.mxu0 0.0
        %1144 = vmatprep.subr.mxu0 0.0
        %1145 = vmatpush2.msra.mxu0 0.0
        %1146 = vmatprep.subr.mxu0 0.0
        %1147 = vmatpush2.msra.mxu0 0.0
        %1148 = vmatprep.subr.mxu0 0.0
        %1149 = vmatpush2.msra.mxu0 0.0
        %1150 = vmatprep.mubr.f32.mxu0 0.0
        %v1151 = vand.u32 %v233, 4294901760
        %1152 = vmatmul.mubr.f32.gmra.mxu0 %v1151
        %v1153 = vpop.f32.mrf.mxu0
        %v1154 = vadd.f32 %v1025, %v1153
        %v1155 = vpop.f32.mrf.mxu0
        %1156 = vmatprep.mubr.f32.mxu0 0.0
        %v1157 = vand.u32 %v234, 4294901760
        %1158 = vmatmul.mubr.f32.gmra.mxu0 %v1157
        %v1159 = vpop.f32.mrf.mxu0
        %v1160 = vadd.f32 %v1031, %v1159
        %v1161 = vpop.f32.mrf.mxu0
        %1162 = vmatprep.mubr.f32.mxu0 0.0
        %v1163 = vand.u32 %v235, 4294901760
        %1164 = vmatmul.mubr.f32.gmra.mxu0 %v1163
        %v1165 = vpop.f32.mrf.mxu0
        %v1166 = vadd.f32 %v1037, %v1165
        %v1167 = vpop.f32.mrf.mxu0
        %1168 = vmatprep.mubr.f32.mxu0 0.0
        %v1169 = vand.u32 %v236, 4294901760
        %1170 = vmatmul.mubr.f32.gmra.mxu0 %v1169
        %v1171 = vpop.f32.mrf.mxu0
        %v1172 = vadd.f32 %v1043, %v1171
        %v1173 = vpop.f32.mrf.mxu0
        %1174 = vmatprep.mubr.f32.mxu0 0.0
        %v1175 = vand.u32 %v237, 4294901760
        %1176 = vmatmul.mubr.f32.gmra.mxu0 %v1175
        %v1177 = vpop.f32.mrf.mxu0
        %v1178 = vadd.f32 %v1049, %v1177
        %v1179 = vpop.f32.mrf.mxu0
        %1180 = vmatprep.mubr.f32.mxu0 0.0
        %v1181 = vand.u32 %v238, 4294901760
        %1182 = vmatmul.mubr.f32.gmra.mxu0 %v1181
        %v1183 = vpop.f32.mrf.mxu0
        %v1184 = vadd.f32 %v1055, %v1183
        %v1185 = vpop.f32.mrf.mxu0
        %1186 = vmatprep.mubr.f32.mxu0 0.0
        %v1187 = vand.u32 %v239, 4294901760
        %1188 = vmatmul.mubr.f32.gmra.mxu0 %v1187
        %v1189 = vpop.f32.mrf.mxu0
        %v1190 = vadd.f32 %v1061, %v1189
        %v1191 = vpop.f32.mrf.mxu0
        %1192 = vmatprep.mubr.f32.mxu0 0.0
        %v1193 = vand.u32 %v240, 4294901760
        %1194 = vmatmul.mubr.f32.gmra.mxu0 %v1193
        %v1195 = vpop.f32.mrf.mxu0
        %v1196 = vadd.f32 %v1067, %v1195
        %v1197 = vpop.f32.mrf.mxu0
        %1198 = vdwg.mxu0
        %v1199 = vsub.f32 %v233, %v1154
        %v1200 = vsub.f32 %v234, %v1160
        %v1201 = vsub.f32 %v235, %v1166
        %v1202 = vsub.f32 %v236, %v1172
        %v1203 = vsub.f32 %v237, %v1178
        %v1204 = vsub.f32 %v238, %v1184
        %v1205 = vsub.f32 %v239, %v1190
        %v1206 = vsub.f32 %v240, %v1196
        %v1207 = vmul.f32 %v1199, %v1199
        %v1208 = vmul.f32 %v1200, %v1200
        %v1209 = vmul.f32 %v1201, %v1201
        %v1210 = vmul.f32 %v1202, %v1202
        %v1211 = vmul.f32 %v1203, %v1203
        %v1212 = vmul.f32 %v1204, %v1204
        %v1213 = vmul.f32 %v1205, %v1205
        %v1214 = vmul.f32 %v1206, %v1206
        %1215 = vmatprep.subr.mxu0 0.0
        %v1216 = vand.u32 %v256, 4294901760
        %1217 = vmatpush1.msra.mxu0 %v1216
        %1218 = vmatprep.subr.mxu0 0.0
        %v1219 = vand.u32 %v255, 4294901760
        %1220 = vmatpush1.msra.mxu0 %v1219
        %1221 = vmatprep.subr.mxu0 0.0
        %v1222 = vand.u32 %v254, 4294901760
        %1223 = vmatpush1.msra.mxu0 %v1222
        %1224 = vmatprep.subr.mxu0 0.0
        %v1225 = vand.u32 %v253, 4294901760
        %1226 = vmatpush1.msra.mxu0 %v1225
        %1227 = vmatprep.subr.mxu0 0.0
        %v1228 = vand.u32 %v252, 4294901760
        %1229 = vmatpush1.msra.mxu0 %v1228
        %1230 = vmatprep.subr.mxu0 0.0
        %v1231 = vand.u32 %v251, 4294901760
        %1232 = vmatpush1.msra.mxu0 %v1231
        %1233 = vmatprep.subr.mxu0 0.0
        %v1234 = vand.u32 %v250, 4294901760
        %1235 = vmatpush1.msra.mxu0 %v1234
        %1236 = vmatprep.subr.mxu0 0.0
        %v1237 = vand.u32 %v249, 4294901760
        %1238 = vmatpush1.msra.mxu0 %v1237
        %1239 = vmatprep.subr.mxu0 0.0
        %v1240 = vand.u32 %v248, 4294901760
        %1241 = vmatpush1.msra.mxu0 %v1240
        %1242 = vmatprep.subr.mxu0 0.0
        %v1243 = vand.u32 %v247, 4294901760
        %1244 = vmatpush1.msra.mxu0 %v1243
        %1245 = vmatprep.subr.mxu0 0.0
        %v1246 = vand.u32 %v246, 4294901760
        %1247 = vmatpush1.msra.mxu0 %v1246
        %1248 = vmatprep.subr.mxu0 0.0
        %v1249 = vand.u32 %v245, 4294901760
        %1250 = vmatpush1.msra.mxu0 %v1249
        %1251 = vmatprep.subr.mxu0 0.0
        %v1252 = vand.u32 %v244, 4294901760
        %1253 = vmatpush1.msra.mxu0 %v1252
        %1254 = vmatprep.subr.mxu0 0.0
        %v1255 = vand.u32 %v243, 4294901760
        %1256 = vmatpush1.msra.mxu0 %v1255
        %1257 = vmatprep.subr.mxu0 0.0
        %v1258 = vand.u32 %v242, 4294901760
        %1259 = vmatpush1.msra.mxu0 %v1258
        %1260 = vmatprep.subr.mxu0 0.0
        %v1261 = vand.u32 %v241, 4294901760
        %1262 = vmatpush1.msra.mxu0 %v1261
        %1263 = vmatprep.subr.mxu0 0.0
        %1264 = vmatpush2.msra.mxu0 0.0
        %1265 = vmatprep.subr.mxu0 0.0
        %1266 = vmatpush2.msra.mxu0 0.0
        %1267 = vmatprep.subr.mxu0 0.0
        %1268 = vmatpush2.msra.mxu0 0.0
        %1269 = vmatprep.subr.mxu0 0.0
        %1270 = vmatpush2.msra.mxu0 0.0
        %1271 = vmatprep.subr.mxu0 0.0
        %1272 = vmatpush2.msra.mxu0 0.0
        %1273 = vmatprep.subr.mxu0 0.0
        %1274 = vmatpush2.msra.mxu0 0.0
        %1275 = vmatprep.subr.mxu0 0.0
        %1276 = vmatpush2.msra.mxu0 0.0
        %1277 = vmatprep.subr.mxu0 0.0
        %1278 = vmatpush2.msra.mxu0 0.0
        %1279 = vmatprep.subr.mxu0 0.0
        %1280 = vmatpush2.msra.mxu0 0.0
        %1281 = vmatprep.subr.mxu0 0.0
        %1282 = vmatpush2.msra.mxu0 0.0
        %1283 = vmatprep.subr.mxu0 0.0
        %1284 = vmatpush2.msra.mxu0 0.0
        %1285 = vmatprep.subr.mxu0 0.0
        %1286 = vmatpush2.msra.mxu0 0.0
        %1287 = vmatprep.subr.mxu0 0.0
        %1288 = vmatpush2.msra.mxu0 0.0
        %1289 = vmatprep.subr.mxu0 0.0
        %1290 = vmatpush2.msra.mxu0 0.0
        %1291 = vmatprep.subr.mxu0 0.0
        %1292 = vmatpush2.msra.mxu0 0.0
        %1293 = vmatprep.subr.mxu0 0.0
        %1294 = vmatpush2.msra.mxu0 0.0
        %1295 = vmatprep.mubr.f32.mxu0 0.0
        %v1296 = vand.u32 %v1207, 4294901760
        %v1297 = vsub.f32 %v1207, %v1296
        %v1298 = vand.u32 %v1297, 4294901760
        %v1299 = vsub.f32 %v1297, %v1298
        %v1300 = vand.u32 %v1299, 4294901760
        %1301 = vmatmul.mubr.f32.gmra.mxu0 %v1300
        %v1302 = vpop.f32.mrf.mxu0
        %v1303 = vadd.f32 1e-05, %v1302
        %v1304 = vpop.f32.mrf.mxu0
        %1305 = vmatprep.mubr.f32.mxu0 0.0
        %v1306 = vand.u32 %v1208, 4294901760
        %v1307 = vsub.f32 %v1208, %v1306
        %v1308 = vand.u32 %v1307, 4294901760
        %v1309 = vsub.f32 %v1307, %v1308
        %v1310 = vand.u32 %v1309, 4294901760
        %1311 = vmatmul.mubr.f32.gmra.mxu0 %v1310
        %v1312 = vpop.f32.mrf.mxu0
        %v1313 = vadd.f32 1e-05, %v1312
        %v1314 = vpop.f32.mrf.mxu0
        %1315 = vmatprep.mubr.f32.mxu0 0.0
        %v1316 = vand.u32 %v1209, 4294901760
        %v1317 = vsub.f32 %v1209, %v1316
        %v1318 = vand.u32 %v1317, 4294901760
        %v1319 = vsub.f32 %v1317, %v1318
        %v1320 = vand.u32 %v1319, 4294901760
        %1321 = vmatmul.mubr.f32.gmra.mxu0 %v1320
        %v1322 = vpop.f32.mrf.mxu0
        %v1323 = vadd.f32 1e-05, %v1322
        %v1324 = vpop.f32.mrf.mxu0
        %1325 = vmatprep.mubr.f32.mxu0 0.0
        %v1326 = vand.u32 %v1210, 4294901760
        %v1327 = vsub.f32 %v1210, %v1326
        %v1328 = vand.u32 %v1327, 4294901760
        %v1329 = vsub.f32 %v1327, %v1328
        %v1330 = vand.u32 %v1329, 4294901760
        %1331 = vmatmul.mubr.f32.gmra.mxu0 %v1330
        %v1332 = vpop.f32.mrf.mxu0
        %v1333 = vadd.f32 1e-05, %v1332
        %v1334 = vpop.f32.mrf.mxu0
        %1335 = vmatprep.mubr.f32.mxu0 0.0
        %v1336 = vand.u32 %v1211, 4294901760
        %v1337 = vsub.f32 %v1211, %v1336
        %v1338 = vand.u32 %v1337, 4294901760
        %v1339 = vsub.f32 %v1337, %v1338
        %v1340 = vand.u32 %v1339, 4294901760
        %1341 = vmatmul.mubr.f32.gmra.mxu0 %v1340
        %v1342 = vpop.f32.mrf.mxu0
        %v1343 = vadd.f32 1e-05, %v1342
        %v1344 = vpop.f32.mrf.mxu0
        %1345 = vmatprep.mubr.f32.mxu0 0.0
        %v1346 = vand.u32 %v1212, 4294901760
        %v1347 = vsub.f32 %v1212, %v1346
        %v1348 = vand.u32 %v1347, 4294901760
        %v1349 = vsub.f32 %v1347, %v1348
        %v1350 = vand.u32 %v1349, 4294901760
        %1351 = vmatmul.mubr.f32.gmra.mxu0 %v1350
        %v1352 = vpop.f32.mrf.mxu0
        %v1353 = vadd.f32 1e-05, %v1352
        %v1354 = vpop.f32.mrf.mxu0
        %1355 = vmatprep.mubr.f32.mxu0 0.0
        %v1356 = vand.u32 %v1213, 4294901760
        %v1357 = vsub.f32 %v1213, %v1356
        %v1358 = vand.u32 %v1357, 4294901760
        %v1359 = vsub.f32 %v1357, %v1358
        %v1360 = vand.u32 %v1359, 4294901760
        %1361 = vmatmul.mubr.f32.gmra.mxu0 %v1360
        %v1362 = vpop.f32.mrf.mxu0
        %v1363 = vadd.f32 1e-05, %v1362
        %v1364 = vpop.f32.mrf.mxu0
        %1365 = vmatprep.mubr.f32.mxu0 0.0
        %v1366 = vand.u32 %v1214, 4294901760
        %v1367 = vsub.f32 %v1214, %v1366
        %v1368 = vand.u32 %v1367, 4294901760
        %v1369 = vsub.f32 %v1367, %v1368
        %v1370 = vand.u32 %v1369, 4294901760
        %1371 = vmatmul.mubr.f32.gmra.mxu0 %v1370
        %v1372 = vpop.f32.mrf.mxu0
        %v1373 = vadd.f32 1e-05, %v1372
        %v1374 = vpop.f32.mrf.mxu0
        %1375 = vdwg.mxu0
        %1376 = vmatprep.subr.mxu0 0.0
        %v1377 = vand.u32 %v256, 4294901760
        %v1378 = vsub.f32 %v256, %v1377
        %v1379 = vand.u32 %v1378, 4294901760
        %v1380 = vsub.f32 %v1378, %v1379
        %v1381 = vand.u32 %v1380, 4294901760
        %1382 = vmatpush1.msra.mxu0 %v1381
        %1383 = vmatprep.subr.mxu0 0.0
        %v1384 = vand.u32 %v255, 4294901760
        %v1385 = vsub.f32 %v255, %v1384
        %v1386 = vand.u32 %v1385, 4294901760
        %v1387 = vsub.f32 %v1385, %v1386
        %v1388 = vand.u32 %v1387, 4294901760
        %1389 = vmatpush1.msra.mxu0 %v1388
        %1390 = vmatprep.subr.mxu0 0.0
        %v1391 = vand.u32 %v254, 4294901760
        %v1392 = vsub.f32 %v254, %v1391
        %v1393 = vand.u32 %v1392, 4294901760
        %v1394 = vsub.f32 %v1392, %v1393
        %v1395 = vand.u32 %v1394, 4294901760
        %1396 = vmatpush1.msra.mxu0 %v1395
        %1397 = vmatprep.subr.mxu0 0.0
        %v1398 = vand.u32 %v253, 4294901760
        %v1399 = vsub.f32 %v253, %v1398
        %v1400 = vand.u32 %v1399, 4294901760
        %v1401 = vsub.f32 %v1399, %v1400
        %v1402 = vand.u32 %v1401, 4294901760
        %1403 = vmatpush1.msra.mxu0 %v1402
        %1404 = vmatprep.subr.mxu0 0.0
        %v1405 = vand.u32 %v252, 4294901760
        %v1406 = vsub.f32 %v252, %v1405
        %v1407 = vand.u32 %v1406, 4294901760
        %v1408 = vsub.f32 %v1406, %v1407
        %v1409 = vand.u32 %v1408, 4294901760
        %1410 = vmatpush1.msra.mxu0 %v1409
        %1411 = vmatprep.subr.mxu0 0.0
        %v1412 = vand.u32 %v251, 4294901760
        %v1413 = vsub.f32 %v251, %v1412
        %v1414 = vand.u32 %v1413, 4294901760
        %v1415 = vsub.f32 %v1413, %v1414
        %v1416 = vand.u32 %v1415, 4294901760
        %1417 = vmatpush1.msra.mxu0 %v1416
        %1418 = vmatprep.subr.mxu0 0.0
        %v1419 = vand.u32 %v250, 4294901760
        %v1420 = vsub.f32 %v250, %v1419
        %v1421 = vand.u32 %v1420, 4294901760
        %v1422 = vsub.f32 %v1420, %v1421
        %v1423 = vand.u32 %v1422, 4294901760
        %1424 = vmatpush1.msra.mxu0 %v1423
        %1425 = vmatprep.subr.mxu0 0.0
        %v1426 = vand.u32 %v249, 4294901760
        %v1427 = vsub.f32 %v249, %v1426
        %v1428 = vand.u32 %v1427, 4294901760
        %v1429 = vsub.f32 %v1427, %v1428
        %v1430 = vand.u32 %v1429, 4294901760
        %1431 = vmatpush1.msra.mxu0 %v1430
        %1432 = vmatprep.subr.mxu0 0.0
        %v1433 = vand.u32 %v248, 4294901760
        %v1434 = vsub.f32 %v248, %v1433
        %v1435 = vand.u32 %v1434, 4294901760
        %v1436 = vsub.f32 %v1434, %v1435
        %v1437 = vand.u32 %v1436, 4294901760
        %1438 = vmatpush1.msra.mxu0 %v1437
        %1439 = vmatprep.subr.mxu0 0.0
        %v1440 = vand.u32 %v247, 4294901760
        %v1441 = vsub.f32 %v247, %v1440
        %v1442 = vand.u32 %v1441, 4294901760
        %v1443 = vsub.f32 %v1441, %v1442
        %v1444 = vand.u32 %v1443, 4294901760
        %1445 = vmatpush1.msra.mxu0 %v1444
        %1446 = vmatprep.subr.mxu0 0.0
        %v1447 = vand.u32 %v246, 4294901760
        %v1448 = vsub.f32 %v246, %v1447
        %v1449 = vand.u32 %v1448, 4294901760
        %v1450 = vsub.f32 %v1448, %v1449
        %v1451 = vand.u32 %v1450, 4294901760
        %1452 = vmatpush1.msra.mxu0 %v1451
        %1453 = vmatprep.subr.mxu0 0.0
        %v1454 = vand.u32 %v245, 4294901760
        %v1455 = vsub.f32 %v245, %v1454
        %v1456 = vand.u32 %v1455, 4294901760
        %v1457 = vsub.f32 %v1455, %v1456
        %v1458 = vand.u32 %v1457, 4294901760
        %1459 = vmatpush1.msra.mxu0 %v1458
        %1460 = vmatprep.subr.mxu0 0.0
        %v1461 = vand.u32 %v244, 4294901760
        %v1462 = vsub.f32 %v244, %v1461
        %v1463 = vand.u32 %v1462, 4294901760
        %v1464 = vsub.f32 %v1462, %v1463
        %v1465 = vand.u32 %v1464, 4294901760
        %1466 = vmatpush1.msra.mxu0 %v1465
        %1467 = vmatprep.subr.mxu0 0.0
        %v1468 = vand.u32 %v243, 4294901760
        %v1469 = vsub.f32 %v243, %v1468
        %v1470 = vand.u32 %v1469, 4294901760
        %v1471 = vsub.f32 %v1469, %v1470
        %v1472 = vand.u32 %v1471, 4294901760
        %1473 = vmatpush1.msra.mxu0 %v1472
        %1474 = vmatprep.subr.mxu0 0.0
        %v1475 = vand.u32 %v242, 4294901760
        %v1476 = vsub.f32 %v242, %v1475
        %v1477 = vand.u32 %v1476, 4294901760
        %v1478 = vsub.f32 %v1476, %v1477
        %v1479 = vand.u32 %v1478, 4294901760
        %1480 = vmatpush1.msra.mxu0 %v1479
        %1481 = vmatprep.subr.mxu0 0.0
        %v1482 = vand.u32 %v241, 4294901760
        %v1483 = vsub.f32 %v241, %v1482
        %v1484 = vand.u32 %v1483, 4294901760
        %v1485 = vsub.f32 %v1483, %v1484
        %v1486 = vand.u32 %v1485, 4294901760
        %1487 = vmatpush1.msra.mxu0 %v1486
        %1488 = vmatprep.subr.mxu0 0.0
        %1489 = vmatpush2.msra.mxu0 0.0
        %1490 = vmatprep.subr.mxu0 0.0
        %1491 = vmatpush2.msra.mxu0 0.0
        %1492 = vmatprep.subr.mxu0 0.0
        %1493 = vmatpush2.msra.mxu0 0.0
        %1494 = vmatprep.subr.mxu0 0.0
        %1495 = vmatpush2.msra.mxu0 0.0
        %1496 = vmatprep.subr.mxu0 0.0
        %1497 = vmatpush2.msra.mxu0 0.0
        %1498 = vmatprep.subr.mxu0 0.0
        %1499 = vmatpush2.msra.mxu0 0.0
        %1500 = vmatprep.subr.mxu0 0.0
        %1501 = vmatpush2.msra.mxu0 0.0
        %1502 = vmatprep.subr.mxu0 0.0
        %1503 = vmatpush2.msra.mxu0 0.0
        %1504 = vmatprep.subr.mxu0 0.0
        %1505 = vmatpush2.msra.mxu0 0.0
        %1506 = vmatprep.subr.mxu0 0.0
        %1507 = vmatpush2.msra.mxu0 0.0
        %1508 = vmatprep.subr.mxu0 0.0
        %1509 = vmatpush2.msra.mxu0 0.0
        %1510 = vmatprep.subr.mxu0 0.0
        %1511 = vmatpush2.msra.mxu0 0.0
        %1512 = vmatprep.subr.mxu0 0.0
        %1513 = vmatpush2.msra.mxu0 0.0
        %1514 = vmatprep.subr.mxu0 0.0
        %1515 = vmatpush2.msra.mxu0 0.0
        %1516 = vmatprep.subr.mxu0 0.0
        %1517 = vmatpush2.msra.mxu0 0.0
        %1518 = vmatprep.subr.mxu0 0.0
        %1519 = vmatpush2.msra.mxu0 0.0
        %1520 = vmatprep.mubr.f32.mxu0 0.0
        %v1521 = vand.u32 %v1207, 4294901760
        %1522 = vmatmul.mubr.f32.gmra.mxu0 %v1521
        %v1523 = vpop.f32.mrf.mxu0
        %v1524 = vadd.f32 %v1303, %v1523
        %v1525 = vpop.f32.mrf.mxu0
        %1526 = vmatprep.mubr.f32.mxu0 0.0
        %v1527 = vand.u32 %v1208, 4294901760
        %1528 = vmatmul.mubr.f32.gmra.mxu0 %v1527
        %v1529 = vpop.f32.mrf.mxu0
        %v1530 = vadd.f32 %v1313, %v1529
        %v1531 = vpop.f32.mrf.mxu0
        %1532 = vmatprep.mubr.f32.mxu0 0.0
        %v1533 = vand.u32 %v1209, 4294901760
        %1534 = vmatmul.mubr.f32.gmra.mxu0 %v1533
        %v1535 = vpop.f32.mrf.mxu0
        %v1536 = vadd.f32 %v1323, %v1535
        %v1537 = vpop.f32.mrf.mxu0
        %1538 = vmatprep.mubr.f32.mxu0 0.0
        %v1539 = vand.u32 %v1210, 4294901760
        %1540 = vmatmul.mubr.f32.gmra.mxu0 %v1539
        %v1541 = vpop.f32.mrf.mxu0
        %v1542 = vadd.f32 %v1333, %v1541
        %v1543 = vpop.f32.mrf.mxu0
        %1544 = vmatprep.mubr.f32.mxu0 0.0
        %v1545 = vand.u32 %v1211, 4294901760
        %1546 = vmatmul.mubr.f32.gmra.mxu0 %v1545
        %v1547 = vpop.f32.mrf.mxu0
        %v1548 = vadd.f32 %v1343, %v1547
        %v1549 = vpop.f32.mrf.mxu0
        %1550 = vmatprep.mubr.f32.mxu0 0.0
        %v1551 = vand.u32 %v1212, 4294901760
        %1552 = vmatmul.mubr.f32.gmra.mxu0 %v1551
        %v1553 = vpop.f32.mrf.mxu0
        %v1554 = vadd.f32 %v1353, %v1553
        %v1555 = vpop.f32.mrf.mxu0
        %1556 = vmatprep.mubr.f32.mxu0 0.0
        %v1557 = vand.u32 %v1213, 4294901760
        %1558 = vmatmul.mubr.f32.gmra.mxu0 %v1557
        %v1559 = vpop.f32.mrf.mxu0
        %v1560 = vadd.f32 %v1363, %v1559
        %v1561 = vpop.f32.mrf.mxu0
        %1562 = vmatprep.mubr.f32.mxu0 0.0
        %v1563 = vand.u32 %v1214, 4294901760
        %1564 = vmatmul.mubr.f32.gmra.mxu0 %v1563
        %v1565 = vpop.f32.mrf.mxu0
        %v1566 = vadd.f32 %v1373, %v1565
        %v1567 = vpop.f32.mrf.mxu0
        %1568 = vdwg.mxu0
        %1569 = vmatprep.subr.mxu0 0.0
        %v1570 = vand.u32 %v256, 4294901760
        %v1571 = vsub.f32 %v256, %v1570
        %1572 = vmatpush1.msra.mxu0 %v1571
        %1573 = vmatprep.subr.mxu0 0.0
        %v1574 = vand.u32 %v255, 4294901760
        %v1575 = vsub.f32 %v255, %v1574
        %1576 = vmatpush1.msra.mxu0 %v1575
        %1577 = vmatprep.subr.mxu0 0.0
        %v1578 = vand.u32 %v254, 4294901760
        %v1579 = vsub.f32 %v254, %v1578
        %1580 = vmatpush1.msra.mxu0 %v1579
        %1581 = vmatprep.subr.mxu0 0.0
        %v1582 = vand.u32 %v253, 4294901760
        %v1583 = vsub.f32 %v253, %v1582
        %1584 = vmatpush1.msra.mxu0 %v1583
        %1585 = vmatprep.subr.mxu0 0.0
        %v1586 = vand.u32 %v252, 4294901760
        %v1587 = vsub.f32 %v252, %v1586
        %1588 = vmatpush1.msra.mxu0 %v1587
        %1589 = vmatprep.subr.mxu0 0.0
        %v1590 = vand.u32 %v251, 4294901760
        %v1591 = vsub.f32 %v251, %v1590
        %1592 = vmatpush1.msra.mxu0 %v1591
        %1593 = vmatprep.subr.mxu0 0.0
        %v1594 = vand.u32 %v250, 4294901760
        %v1595 = vsub.f32 %v250, %v1594
        %1596 = vmatpush1.msra.mxu0 %v1595
        %1597 = vmatprep.subr.mxu0 0.0
        %v1598 = vand.u32 %v249, 4294901760
        %v1599 = vsub.f32 %v249, %v1598
        %1600 = vmatpush1.msra.mxu0 %v1599
        %1601 = vmatprep.subr.mxu0 0.0
        %v1602 = vand.u32 %v248, 4294901760
        %v1603 = vsub.f32 %v248, %v1602
        %1604 = vmatpush1.msra.mxu0 %v1603
        %1605 = vmatprep.subr.mxu0 0.0
        %v1606 = vand.u32 %v247, 4294901760
        %v1607 = vsub.f32 %v247, %v1606
        %1608 = vmatpush1.msra.mxu0 %v1607
        %1609 = vmatprep.subr.mxu0 0.0
        %v1610 = vand.u32 %v246, 4294901760
        %v1611 = vsub.f32 %v246, %v1610
        %1612 = vmatpush1.msra.mxu0 %v1611
        %1613 = vmatprep.subr.mxu0 0.0
        %v1614 = vand.u32 %v245, 4294901760
        %v1615 = vsub.f32 %v245, %v1614
        %1616 = vmatpush1.msra.mxu0 %v1615
        %1617 = vmatprep.subr.mxu0 0.0
        %v1618 = vand.u32 %v244, 4294901760
        %v1619 = vsub.f32 %v244, %v1618
        %1620 = vmatpush1.msra.mxu0 %v1619
        %1621 = vmatprep.subr.mxu0 0.0
        %v1622 = vand.u32 %v243, 4294901760
        %v1623 = vsub.f32 %v243, %v1622
        %1624 = vmatpush1.msra.mxu0 %v1623
        %1625 = vmatprep.subr.mxu0 0.0
        %v1626 = vand.u32 %v242, 4294901760
        %v1627 = vsub.f32 %v242, %v1626
        %1628 = vmatpush1.msra.mxu0 %v1627
        %1629 = vmatprep.subr.mxu0 0.0
        %v1630 = vand.u32 %v241, 4294901760
        %v1631 = vsub.f32 %v241, %v1630
        %1632 = vmatpush1.msra.mxu0 %v1631
        %1633 = vmatprep.subr.mxu0 0.0
        %1634 = vmatpush2.msra.mxu0 0.0
        %1635 = vmatprep.subr.mxu0 0.0
        %1636 = vmatpush2.msra.mxu0 0.0
        %1637 = vmatprep.subr.mxu0 0.0
        %1638 = vmatpush2.msra.mxu0 0.0
        %1639 = vmatprep.subr.mxu0 0.0
        %1640 = vmatpush2.msra.mxu0 0.0
        %1641 = vmatprep.subr.mxu0 0.0
        %1642 = vmatpush2.msra.mxu0 0.0
        %1643 = vmatprep.subr.mxu0 0.0
        %1644 = vmatpush2.msra.mxu0 0.0
        %1645 = vmatprep.subr.mxu0 0.0
        %1646 = vmatpush2.msra.mxu0 0.0
        %1647 = vmatprep.subr.mxu0 0.0
        %1648 = vmatpush2.msra.mxu0 0.0
        %1649 = vmatprep.subr.mxu0 0.0
        %1650 = vmatpush2.msra.mxu0 0.0
        %1651 = vmatprep.subr.mxu0 0.0
        %1652 = vmatpush2.msra.mxu0 0.0
        %1653 = vmatprep.subr.mxu0 0.0
        %1654 = vmatpush2.msra.mxu0 0.0
        %1655 = vmatprep.subr.mxu0 0.0
        %1656 = vmatpush2.msra.mxu0 0.0
        %1657 = vmatprep.subr.mxu0 0.0
        %1658 = vmatpush2.msra.mxu0 0.0
        %1659 = vmatprep.subr.mxu0 0.0
        %1660 = vmatpush2.msra.mxu0 0.0
        %1661 = vmatprep.subr.mxu0 0.0
        %1662 = vmatpush2.msra.mxu0 0.0
        %1663 = vmatprep.subr.mxu0 0.0
        %1664 = vmatpush2.msra.mxu0 0.0
        %1665 = vmatprep.mubr.f32.mxu0 0.0
        %v1666 = vand.u32 %v1207, 4294901760
        %v1667 = vsub.f32 %v1207, %v1666
        %1668 = vmatmul.mubr.f32.gmra.mxu0 %v1667
        %v1669 = vpop.f32.mrf.mxu0
        %v1670 = vadd.f32 %v1524, %v1669
        %v1671 = vpop.f32.mrf.mxu0
        %1672 = vmatprep.mubr.f32.mxu0 0.0
        %v1673 = vand.u32 %v1208, 4294901760
        %v1674 = vsub.f32 %v1208, %v1673
        %1675 = vmatmul.mubr.f32.gmra.mxu0 %v1674
        %v1676 = vpop.f32.mrf.mxu0
        %v1677 = vadd.f32 %v1530, %v1676
        %v1678 = vpop.f32.mrf.mxu0
        %1679 = vmatprep.mubr.f32.mxu0 0.0
        %v1680 = vand.u32 %v1209, 4294901760
        %v1681 = vsub.f32 %v1209, %v1680
        %1682 = vmatmul.mubr.f32.gmra.mxu0 %v1681
        %v1683 = vpop.f32.mrf.mxu0
        %v1684 = vadd.f32 %v1536, %v1683
        %v1685 = vpop.f32.mrf.mxu0
        %1686 = vmatprep.mubr.f32.mxu0 0.0
        %v1687 = vand.u32 %v1210, 4294901760
        %v1688 = vsub.f32 %v1210, %v1687
        %1689 = vmatmul.mubr.f32.gmra.mxu0 %v1688
        %v1690 = vpop.f32.mrf.mxu0
        %v1691 = vadd.f32 %v1542, %v1690
        %v1692 = vpop.f32.mrf.mxu0
        %1693 = vmatprep.mubr.f32.mxu0 0.0
        %v1694 = vand.u32 %v1211, 4294901760
        %v1695 = vsub.f32 %v1211, %v1694
        %1696 = vmatmul.mubr.f32.gmra.mxu0 %v1695
        %v1697 = vpop.f32.mrf.mxu0
        %v1698 = vadd.f32 %v1548, %v1697
        %v1699 = vpop.f32.mrf.mxu0
        %1700 = vmatprep.mubr.f32.mxu0 0.0
        %v1701 = vand.u32 %v1212, 4294901760
        %v1702 = vsub.f32 %v1212, %v1701
        %1703 = vmatmul.mubr.f32.gmra.mxu0 %v1702
        %v1704 = vpop.f32.mrf.mxu0
        %v1705 = vadd.f32 %v1554, %v1704
        %v1706 = vpop.f32.mrf.mxu0
        %1707 = vmatprep.mubr.f32.mxu0 0.0
        %v1708 = vand.u32 %v1213, 4294901760
        %v1709 = vsub.f32 %v1213, %v1708
        %1710 = vmatmul.mubr.f32.gmra.mxu0 %v1709
        %v1711 = vpop.f32.mrf.mxu0
        %v1712 = vadd.f32 %v1560, %v1711
        %v1713 = vpop.f32.mrf.mxu0
        %1714 = vmatprep.mubr.f32.mxu0 0.0
        %v1715 = vand.u32 %v1214, 4294901760
        %v1716 = vsub.f32 %v1214, %v1715
        %1717 = vmatmul.mubr.f32.gmra.mxu0 %v1716
        %v1718 = vpop.f32.mrf.mxu0
        %v1719 = vadd.f32 %v1566, %v1718
        %v1720 = vpop.f32.mrf.mxu0
        %1721 = vdwg.mxu0
        %1722 = vmatprep.subr.mxu0 0.0
        %v1723 = vand.u32 %v256, 4294901760
        %1724 = vmatpush1.msra.mxu0 %v1723
        %1725 = vmatprep.subr.mxu0 0.0
        %v1726 = vand.u32 %v255, 4294901760
        %1727 = vmatpush1.msra.mxu0 %v1726
        %1728 = vmatprep.subr.mxu0 0.0
        %v1729 = vand.u32 %v254, 4294901760
        %1730 = vmatpush1.msra.mxu0 %v1729
        %1731 = vmatprep.subr.mxu0 0.0
        %v1732 = vand.u32 %v253, 4294901760
        %1733 = vmatpush1.msra.mxu0 %v1732
        %1734 = vmatprep.subr.mxu0 0.0
        %v1735 = vand.u32 %v252, 4294901760
        %1736 = vmatpush1.msra.mxu0 %v1735
        %1737 = vmatprep.subr.mxu0 0.0
        %v1738 = vand.u32 %v251, 4294901760
        %1739 = vmatpush1.msra.mxu0 %v1738
        %1740 = vmatprep.subr.mxu0 0.0
        %v1741 = vand.u32 %v250, 4294901760
        %1742 = vmatpush1.msra.mxu0 %v1741
        %1743 = vmatprep.subr.mxu0 0.0
        %v1744 = vand.u32 %v249, 4294901760
        %1745 = vmatpush1.msra.mxu0 %v1744
        %1746 = vmatprep.subr.mxu0 0.0
        %v1747 = vand.u32 %v248, 4294901760
        %1748 = vmatpush1.msra.mxu0 %v1747
        %1749 = vmatprep.subr.mxu0 0.0
        %v1750 = vand.u32 %v247, 4294901760
        %1751 = vmatpush1.msra.mxu0 %v1750
        %1752 = vmatprep.subr.mxu0 0.0
        %v1753 = vand.u32 %v246, 4294901760
        %1754 = vmatpush1.msra.mxu0 %v1753
        %1755 = vmatprep.subr.mxu0 0.0
        %v1756 = vand.u32 %v245, 4294901760
        %1757 = vmatpush1.msra.mxu0 %v1756
        %1758 = vmatprep.subr.mxu0 0.0
        %v1759 = vand.u32 %v244, 4294901760
        %1760 = vmatpush1.msra.mxu0 %v1759
        %1761 = vmatprep.subr.mxu0 0.0
        %v1762 = vand.u32 %v243, 4294901760
        %1763 = vmatpush1.msra.mxu0 %v1762
        %1764 = vmatprep.subr.mxu0 0.0
        %v1765 = vand.u32 %v242, 4294901760
        %1766 = vmatpush1.msra.mxu0 %v1765
        %1767 = vmatprep.subr.mxu0 0.0
        %v1768 = vand.u32 %v241, 4294901760
        %1769 = vmatpush1.msra.mxu0 %v1768
        %1770 = vmatprep.subr.mxu0 0.0
        %1771 = vmatpush2.msra.mxu0 0.0
        %1772 = vmatprep.subr.mxu0 0.0
        %1773 = vmatpush2.msra.mxu0 0.0
        %1774 = vmatprep.subr.mxu0 0.0
        %1775 = vmatpush2.msra.mxu0 0.0
        %1776 = vmatprep.subr.mxu0 0.0
        %1777 = vmatpush2.msra.mxu0 0.0
        %1778 = vmatprep.subr.mxu0 0.0
        %1779 = vmatpush2.msra.mxu0 0.0
        %1780 = vmatprep.subr.mxu0 0.0
        %1781 = vmatpush2.msra.mxu0 0.0
        %1782 = vmatprep.subr.mxu0 0.0
        %1783 = vmatpush2.msra.mxu0 0.0
        %1784 = vmatprep.subr.mxu0 0.0
        %1785 = vmatpush2.msra.mxu0 0.0
        %1786 = vmatprep.subr.mxu0 0.0
        %1787 = vmatpush2.msra.mxu0 0.0
        %1788 = vmatprep.subr.mxu0 0.0
        %1789 = vmatpush2.msra.mxu0 0.0
        %1790 = vmatprep.subr.mxu0 0.0
        %1791 = vmatpush2.msra.mxu0 0.0
        %1792 = vmatprep.subr.mxu0 0.0
        %1793 = vmatpush2.msra.mxu0 0.0
        %1794 = vmatprep.subr.mxu0 0.0
        %1795 = vmatpush2.msra.mxu0 0.0
        %1796 = vmatprep.subr.mxu0 0.0
        %1797 = vmatpush2.msra.mxu0 0.0
        %1798 = vmatprep.subr.mxu0 0.0
        %1799 = vmatpush2.msra.mxu0 0.0
        %1800 = vmatprep.subr.mxu0 0.0
        %1801 = vmatpush2.msra.mxu0 0.0
        %1802 = vmatprep.mubr.f32.mxu0 0.0
        %v1803 = vand.u32 %v1207, 4294901760
        %v1804 = vsub.f32 %v1207, %v1803
        %v1805 = vand.u32 %v1804, 4294901760
        %1806 = vmatmul.mubr.f32.gmra.mxu0 %v1805
        %v1807 = vpop.f32.mrf.mxu0
        %v1808 = vadd.f32 %v1670, %v1807
        %v1809 = vpop.f32.mrf.mxu0
        %1810 = vmatprep.mubr.f32.mxu0 0.0
        %v1811 = vand.u32 %v1208, 4294901760
        %v1812 = vsub.f32 %v1208, %v1811
        %v1813 = vand.u32 %v1812, 4294901760
        %1814 = vmatmul.mubr.f32.gmra.mxu0 %v1813
        %v1815 = vpop.f32.mrf.mxu0
        %v1816 = vadd.f32 %v1677, %v1815
        %v1817 = vpop.f32.mrf.mxu0
        %1818 = vmatprep.mubr.f32.mxu0 0.0
        %v1819 = vand.u32 %v1209, 4294901760
        %v1820 = vsub.f32 %v1209, %v1819
        %v1821 = vand.u32 %v1820, 4294901760
        %1822 = vmatmul.mubr.f32.gmra.mxu0 %v1821
        %v1823 = vpop.f32.mrf.mxu0
        %v1824 = vadd.f32 %v1684, %v1823
        %v1825 = vpop.f32.mrf.mxu0
        %1826 = vmatprep.mubr.f32.mxu0 0.0
        %v1827 = vand.u32 %v1210, 4294901760
        %v1828 = vsub.f32 %v1210, %v1827
        %v1829 = vand.u32 %v1828, 4294901760
        %1830 = vmatmul.mubr.f32.gmra.mxu0 %v1829
        %v1831 = vpop.f32.mrf.mxu0
        %v1832 = vadd.f32 %v1691, %v1831
        %v1833 = vpop.f32.mrf.mxu0
        %1834 = vmatprep.mubr.f32.mxu0 0.0
        %v1835 = vand.u32 %v1211, 4294901760
        %v1836 = vsub.f32 %v1211, %v1835
        %v1837 = vand.u32 %v1836, 4294901760
        %1838 = vmatmul.mubr.f32.gmra.mxu0 %v1837
        %v1839 = vpop.f32.mrf.mxu0
        %v1840 = vadd.f32 %v1698, %v1839
        %v1841 = vpop.f32.mrf.mxu0
        %1842 = vmatprep.mubr.f32.mxu0 0.0
        %v1843 = vand.u32 %v1212, 4294901760
        %v1844 = vsub.f32 %v1212, %v1843
        %v1845 = vand.u32 %v1844, 4294901760
        %1846 = vmatmul.mubr.f32.gmra.mxu0 %v1845
        %v1847 = vpop.f32.mrf.mxu0
        %v1848 = vadd.f32 %v1705, %v1847
        %v1849 = vpop.f32.mrf.mxu0
        %1850 = vmatprep.mubr.f32.mxu0 0.0
        %v1851 = vand.u32 %v1213, 4294901760
        %v1852 = vsub.f32 %v1213, %v1851
        %v1853 = vand.u32 %v1852, 4294901760
        %1854 = vmatmul.mubr.f32.gmra.mxu0 %v1853
        %v1855 = vpop.f32.mrf.mxu0
        %v1856 = vadd.f32 %v1712, %v1855
        %v1857 = vpop.f32.mrf.mxu0
        %1858 = vmatprep.mubr.f32.mxu0 0.0
        %v1859 = vand.u32 %v1214, 4294901760
        %v1860 = vsub.f32 %v1214, %v1859
        %v1861 = vand.u32 %v1860, 4294901760
        %1862 = vmatmul.mubr.f32.gmra.mxu0 %v1861
        %v1863 = vpop.f32.mrf.mxu0
        %v1864 = vadd.f32 %v1719, %v1863
        %v1865 = vpop.f32.mrf.mxu0
        %1866 = vdwg.mxu0
        %1867 = vmatprep.subr.mxu0 0.0
        %v1868 = vand.u32 %v256, 4294901760
        %v1869 = vsub.f32 %v256, %v1868
        %v1870 = vand.u32 %v1869, 4294901760
        %1871 = vmatpush1.msra.mxu0 %v1870
        %1872 = vmatprep.subr.mxu0 0.0
        %v1873 = vand.u32 %v255, 4294901760
        %v1874 = vsub.f32 %v255, %v1873
        %v1875 = vand.u32 %v1874, 4294901760
        %1876 = vmatpush1.msra.mxu0 %v1875
        %1877 = vmatprep.subr.mxu0 0.0
        %v1878 = vand.u32 %v254, 4294901760
        %v1879 = vsub.f32 %v254, %v1878
        %v1880 = vand.u32 %v1879, 4294901760
        %1881 = vmatpush1.msra.mxu0 %v1880
        %1882 = vmatprep.subr.mxu0 0.0
        %v1883 = vand.u32 %v253, 4294901760
        %v1884 = vsub.f32 %v253, %v1883
        %v1885 = vand.u32 %v1884, 4294901760
        %1886 = vmatpush1.msra.mxu0 %v1885
        %1887 = vmatprep.subr.mxu0 0.0
        %v1888 = vand.u32 %v252, 4294901760
        %v1889 = vsub.f32 %v252, %v1888
        %v1890 = vand.u32 %v1889, 4294901760
        %1891 = vmatpush1.msra.mxu0 %v1890
        %1892 = vmatprep.subr.mxu0 0.0
        %v1893 = vand.u32 %v251, 4294901760
        %v1894 = vsub.f32 %v251, %v1893
        %v1895 = vand.u32 %v1894, 4294901760
        %1896 = vmatpush1.msra.mxu0 %v1895
        %1897 = vmatprep.subr.mxu0 0.0
        %v1898 = vand.u32 %v250, 4294901760
        %v1899 = vsub.f32 %v250, %v1898
        %v1900 = vand.u32 %v1899, 4294901760
        %1901 = vmatpush1.msra.mxu0 %v1900
        %1902 = vmatprep.subr.mxu0 0.0
        %v1903 = vand.u32 %v249, 4294901760
        %v1904 = vsub.f32 %v249, %v1903
        %v1905 = vand.u32 %v1904, 4294901760
        %1906 = vmatpush1.msra.mxu0 %v1905
        %1907 = vmatprep.subr.mxu0 0.0
        %v1908 = vand.u32 %v248, 4294901760
        %v1909 = vsub.f32 %v248, %v1908
        %v1910 = vand.u32 %v1909, 4294901760
        %1911 = vmatpush1.msra.mxu0 %v1910
        %1912 = vmatprep.subr.mxu0 0.0
        %v1913 = vand.u32 %v247, 4294901760
        %v1914 = vsub.f32 %v247, %v1913
        %v1915 = vand.u32 %v1914, 4294901760
        %1916 = vmatpush1.msra.mxu0 %v1915
        %1917 = vmatprep.subr.mxu0 0.0
        %v1918 = vand.u32 %v246, 4294901760
        %v1919 = vsub.f32 %v246, %v1918
        %v1920 = vand.u32 %v1919, 4294901760
        %1921 = vmatpush1.msra.mxu0 %v1920
        %1922 = vmatprep.subr.mxu0 0.0
        %v1923 = vand.u32 %v245, 4294901760
        %v1924 = vsub.f32 %v245, %v1923
        %v1925 = vand.u32 %v1924, 4294901760
        %1926 = vmatpush1.msra.mxu0 %v1925
        %1927 = vmatprep.subr.mxu0 0.0
        %v1928 = vand.u32 %v244, 4294901760
        %v1929 = vsub.f32 %v244, %v1928
        %v1930 = vand.u32 %v1929, 4294901760
        %1931 = vmatpush1.msra.mxu0 %v1930
        %1932 = vmatprep.subr.mxu0 0.0
        %v1933 = vand.u32 %v243, 4294901760
        %v1934 = vsub.f32 %v243, %v1933
        %v1935 = vand.u32 %v1934, 4294901760
        %1936 = vmatpush1.msra.mxu0 %v1935
        %1937 = vmatprep.subr.mxu0 0.0
        %v1938 = vand.u32 %v242, 4294901760
        %v1939 = vsub.f32 %v242, %v1938
        %v1940 = vand.u32 %v1939, 4294901760
        %1941 = vmatpush1.msra.mxu0 %v1940
        %1942 = vmatprep.subr.mxu0 0.0
        %v1943 = vand.u32 %v241, 4294901760
        %v1944 = vsub.f32 %v241, %v1943
        %v1945 = vand.u32 %v1944, 4294901760
        %1946 = vmatpush1.msra.mxu0 %v1945
        %1947 = vmatprep.subr.mxu0 0.0
        %1948 = vmatpush2.msra.mxu0 0.0
        %1949 = vmatprep.subr.mxu0 0.0
        %1950 = vmatpush2.msra.mxu0 0.0
        %1951 = vmatprep.subr.mxu0 0.0
        %1952 = vmatpush2.msra.mxu0 0.0
        %1953 = vmatprep.subr.mxu0 0.0
        %1954 = vmatpush2.msra.mxu0 0.0
        %1955 = vmatprep.subr.mxu0 0.0
        %1956 = vmatpush2.msra.mxu0 0.0
        %1957 = vmatprep.subr.mxu0 0.0
        %1958 = vmatpush2.msra.mxu0 0.0
        %1959 = vmatprep.subr.mxu0 0.0
        %1960 = vmatpush2.msra.mxu0 0.0
        %1961 = vmatprep.subr.mxu0 0.0
        %1962 = vmatpush2.msra.mxu0 0.0
        %1963 = vmatprep.subr.mxu0 0.0
        %1964 = vmatpush2.msra.mxu0 0.0
        %1965 = vmatprep.subr.mxu0 0.0
        %1966 = vmatpush2.msra.mxu0 0.0
        %1967 = vmatprep.subr.mxu0 0.0
        %1968 = vmatpush2.msra.mxu0 0.0
        %1969 = vmatprep.subr.mxu0 0.0
        %1970 = vmatpush2.msra.mxu0 0.0
        %1971 = vmatprep.subr.mxu0 0.0
        %1972 = vmatpush2.msra.mxu0 0.0
        %1973 = vmatprep.subr.mxu0 0.0
        %1974 = vmatpush2.msra.mxu0 0.0
        %1975 = vmatprep.subr.mxu0 0.0
        %1976 = vmatpush2.msra.mxu0 0.0
        %1977 = vmatprep.subr.mxu0 0.0
        %1978 = vmatpush2.msra.mxu0 0.0
        %1979 = vmatprep.mubr.f32.mxu0 0.0
        %v1980 = vand.u32 %v1207, 4294901760
        %1981 = vmatmul.mubr.f32.gmra.mxu0 %v1980
        %v1982 = vpop.f32.mrf.mxu0
        %v1983 = vadd.f32 %v1808, %v1982
        %v1984 = vpop.f32.mrf.mxu0
        %1985 = vmatprep.mubr.f32.mxu0 0.0
        %v1986 = vand.u32 %v1208, 4294901760
        %1987 = vmatmul.mubr.f32.gmra.mxu0 %v1986
        %v1988 = vpop.f32.mrf.mxu0
        %v1989 = vadd.f32 %v1816, %v1988
        %v1990 = vpop.f32.mrf.mxu0
        %1991 = vmatprep.mubr.f32.mxu0 0.0
        %v1992 = vand.u32 %v1209, 4294901760
        %1993 = vmatmul.mubr.f32.gmra.mxu0 %v1992
        %v1994 = vpop.f32.mrf.mxu0
        %v1995 = vadd.f32 %v1824, %v1994
        %v1996 = vpop.f32.mrf.mxu0
        %1997 = vmatprep.mubr.f32.mxu0 0.0
        %v1998 = vand.u32 %v1210, 4294901760
        %1999 = vmatmul.mubr.f32.gmra.mxu0 %v1998
        %v2000 = vpop.f32.mrf.mxu0
        %v2001 = vadd.f32 %v1832, %v2000
        %v2002 = vpop.f32.mrf.mxu0
        %2003 = vmatprep.mubr.f32.mxu0 0.0
        %v2004 = vand.u32 %v1211, 4294901760
        %2005 = vmatmul.mubr.f32.gmra.mxu0 %v2004
        %v2006 = vpop.f32.mrf.mxu0
        %v2007 = vadd.f32 %v1840, %v2006
        %v2008 = vpop.f32.mrf.mxu0
        %2009 = vmatprep.mubr.f32.mxu0 0.0
        %v2010 = vand.u32 %v1212, 4294901760
        %2011 = vmatmul.mubr.f32.gmra.mxu0 %v2010
        %v2012 = vpop.f32.mrf.mxu0
        %v2013 = vadd.f32 %v1848, %v2012
        %v2014 = vpop.f32.mrf.mxu0
        %2015 = vmatprep.mubr.f32.mxu0 0.0
        %v2016 = vand.u32 %v1213, 4294901760
        %2017 = vmatmul.mubr.f32.gmra.mxu0 %v2016
        %v2018 = vpop.f32.mrf.mxu0
        %v2019 = vadd.f32 %v1856, %v2018
        %v2020 = vpop.f32.mrf.mxu0
        %2021 = vmatprep.mubr.f32.mxu0 0.0
        %v2022 = vand.u32 %v1214, 4294901760
        %2023 = vmatmul.mubr.f32.gmra.mxu0 %v2022
        %v2024 = vpop.f32.mrf.mxu0
        %v2025 = vadd.f32 %v1864, %v2024
        %v2026 = vpop.f32.mrf.mxu0
        %2027 = vdwg.mxu0
        %2028 = vmatprep.subr.mxu0 0.0
        %v2029 = vand.u32 %v256, 4294901760
        %2030 = vmatpush1.msra.mxu0 %v2029
        %2031 = vmatprep.subr.mxu0 0.0
        %v2032 = vand.u32 %v255, 4294901760
        %2033 = vmatpush1.msra.mxu0 %v2032
        %2034 = vmatprep.subr.mxu0 0.0
        %v2035 = vand.u32 %v254, 4294901760
        %2036 = vmatpush1.msra.mxu0 %v2035
        %2037 = vmatprep.subr.mxu0 0.0
        %v2038 = vand.u32 %v253, 4294901760
        %2039 = vmatpush1.msra.mxu0 %v2038
        %2040 = vmatprep.subr.mxu0 0.0
        %v2041 = vand.u32 %v252, 4294901760
        %2042 = vmatpush1.msra.mxu0 %v2041
        %2043 = vmatprep.subr.mxu0 0.0
        %v2044 = vand.u32 %v251, 4294901760
        %2045 = vmatpush1.msra.mxu0 %v2044
        %2046 = vmatprep.subr.mxu0 0.0
        %v2047 = vand.u32 %v250, 4294901760
        %2048 = vmatpush1.msra.mxu0 %v2047
        %2049 = vmatprep.subr.mxu0 0.0
        %v2050 = vand.u32 %v249, 4294901760
        %2051 = vmatpush1.msra.mxu0 %v2050
        %2052 = vmatprep.subr.mxu0 0.0
        %v2053 = vand.u32 %v248, 4294901760
        %2054 = vmatpush1.msra.mxu0 %v2053
        %2055 = vmatprep.subr.mxu0 0.0
        %v2056 = vand.u32 %v247, 4294901760
        %2057 = vmatpush1.msra.mxu0 %v2056
        %2058 = vmatprep.subr.mxu0 0.0
        %v2059 = vand.u32 %v246, 4294901760
        %2060 = vmatpush1.msra.mxu0 %v2059
        %2061 = vmatprep.subr.mxu0 0.0
        %v2062 = vand.u32 %v245, 4294901760
        %2063 = vmatpush1.msra.mxu0 %v2062
        %2064 = vmatprep.subr.mxu0 0.0
        %v2065 = vand.u32 %v244, 4294901760
        %2066 = vmatpush1.msra.mxu0 %v2065
        %2067 = vmatprep.subr.mxu0 0.0
        %v2068 = vand.u32 %v243, 4294901760
        %2069 = vmatpush1.msra.mxu0 %v2068
        %2070 = vmatprep.subr.mxu0 0.0
        %v2071 = vand.u32 %v242, 4294901760
        %2072 = vmatpush1.msra.mxu0 %v2071
        %2073 = vmatprep.subr.mxu0 0.0
        %v2074 = vand.u32 %v241, 4294901760
        %2075 = vmatpush1.msra.mxu0 %v2074
        %2076 = vmatprep.subr.mxu0 0.0
        %2077 = vmatpush2.msra.mxu0 0.0
        %2078 = vmatprep.subr.mxu0 0.0
        %2079 = vmatpush2.msra.mxu0 0.0
        %2080 = vmatprep.subr.mxu0 0.0
        %2081 = vmatpush2.msra.mxu0 0.0
        %2082 = vmatprep.subr.mxu0 0.0
        %2083 = vmatpush2.msra.mxu0 0.0
        %2084 = vmatprep.subr.mxu0 0.0
        %2085 = vmatpush2.msra.mxu0 0.0
        %2086 = vmatprep.subr.mxu0 0.0
        %2087 = vmatpush2.msra.mxu0 0.0
        %2088 = vmatprep.subr.mxu0 0.0
        %2089 = vmatpush2.msra.mxu0 0.0
        %2090 = vmatprep.subr.mxu0 0.0
        %2091 = vmatpush2.msra.mxu0 0.0
        %2092 = vmatprep.subr.mxu0 0.0
        %2093 = vmatpush2.msra.mxu0 0.0
        %2094 = vmatprep.subr.mxu0 0.0
        %2095 = vmatpush2.msra.mxu0 0.0
        %2096 = vmatprep.subr.mxu0 0.0
        %2097 = vmatpush2.msra.mxu0 0.0
        %2098 = vmatprep.subr.mxu0 0.0
        %2099 = vmatpush2.msra.mxu0 0.0
        %2100 = vmatprep.subr.mxu0 0.0
        %2101 = vmatpush2.msra.mxu0 0.0
        %2102 = vmatprep.subr.mxu0 0.0
        %2103 = vmatpush2.msra.mxu0 0.0
        %2104 = vmatprep.subr.mxu0 0.0
        %2105 = vmatpush2.msra.mxu0 0.0
        %2106 = vmatprep.subr.mxu0 0.0
        %2107 = vmatpush2.msra.mxu0 0.0
        %2108 = vmatprep.mubr.f32.mxu0 0.0
        %v2109 = vand.u32 %v1207, 4294901760
        %2110 = vmatmul.mubr.f32.gmra.mxu0 %v2109
        %v2111 = vpop.f32.mrf.mxu0
        %v2112 = vadd.f32 %v1983, %v2111
        %v2113 = vpop.f32.mrf.mxu0
        %2114 = vmatprep.mubr.f32.mxu0 0.0
        %v2115 = vand.u32 %v1208, 4294901760
        %2116 = vmatmul.mubr.f32.gmra.mxu0 %v2115
        %v2117 = vpop.f32.mrf.mxu0
        %v2118 = vadd.f32 %v1989, %v2117
        %v2119 = vpop.f32.mrf.mxu0
        %2120 = vmatprep.mubr.f32.mxu0 0.0
        %v2121 = vand.u32 %v1209, 4294901760
        %2122 = vmatmul.mubr.f32.gmra.mxu0 %v2121
        %v2123 = vpop.f32.mrf.mxu0
        %v2124 = vadd.f32 %v1995, %v2123
        %v2125 = vpop.f32.mrf.mxu0
        %2126 = vmatprep.mubr.f32.mxu0 0.0
        %v2127 = vand.u32 %v1210, 4294901760
        %2128 = vmatmul.mubr.f32.gmra.mxu0 %v2127
        %v2129 = vpop.f32.mrf.mxu0
        %v2130 = vadd.f32 %v2001, %v2129
        %v2131 = vpop.f32.mrf.mxu0
        %2132 = vmatprep.mubr.f32.mxu0 0.0
        %v2133 = vand.u32 %v1211, 4294901760
        %2134 = vmatmul.mubr.f32.gmra.mxu0 %v2133
        %v2135 = vpop.f32.mrf.mxu0
        %v2136 = vadd.f32 %v2007, %v2135
        %v2137 = vpop.f32.mrf.mxu0
        %2138 = vmatprep.mubr.f32.mxu0 0.0
        %v2139 = vand.u32 %v1212, 4294901760
        %2140 = vmatmul.mubr.f32.gmra.mxu0 %v2139
        %v2141 = vpop.f32.mrf.mxu0
        %v2142 = vadd.f32 %v2013, %v2141
        %v2143 = vpop.f32.mrf.mxu0
        %2144 = vmatprep.mubr.f32.mxu0 0.0
        %v2145 = vand.u32 %v1213, 4294901760
        %2146 = vmatmul.mubr.f32.gmra.mxu0 %v2145
        %v2147 = vpop.f32.mrf.mxu0
        %v2148 = vadd.f32 %v2019, %v2147
        %v2149 = vpop.f32.mrf.mxu0
        %2150 = vmatprep.mubr.f32.mxu0 0.0
        %v2151 = vand.u32 %v1214, 4294901760
        %2152 = vmatmul.mubr.f32.gmra.mxu0 %v2151
        %v2153 = vpop.f32.mrf.mxu0
        %v2154 = vadd.f32 %v2025, %v2153
        %v2155 = vpop.f32.mrf.mxu0
        %2156 = vdwg.mxu0
        %v2157 = vrsqrt.pop %v2112
        %v2158 = vrsqrt.pop %v2118
        %v2159 = vrsqrt.pop %v2124
        %v2160 = vrsqrt.pop %v2130
        %v2161 = vrsqrt.pop %v2136
        %v2162 = vrsqrt.pop %v2142
        %v2163 = vrsqrt.pop %v2148
        %v2164 = vrsqrt.pop %v2154
        %v2165 = vmul.f32 %v1199, %v2157
        %v2166 = vmul.f32 %v1200, %v2158
        %v2167 = vmul.f32 %v1201, %v2159
        %v2168 = vmul.f32 %v1202, %v2160
        %v2169 = vmul.f32 %v1203, %v2161
        %v2170 = vmul.f32 %v1204, %v2162
        %v2171 = vmul.f32 %v1205, %v2163
        %v2172 = vmul.f32 %v1206, %v2164
        %v2173 = vld [vmem:[%s2] sm:$0x1]
        %v2175 = vlaneseq
        %v2176 = vshrl.u32 %v2175, 7
        %v2177 = vsub.s32 0, %v2176
        %v2178 = vrot.slane %v2173, %v2177
        %v2180 = vmul.f32 %v2165, %v2178
        %v2181 = vmul.f32 %v2166, %v2178
        %v2182 = vmul.f32 %v2167, %v2178
        %v2183 = vmul.f32 %v2168, %v2178
        %v2184 = vmul.f32 %v2169, %v2178
        %v2185 = vmul.f32 %v2170, %v2178
        %v2186 = vmul.f32 %v2171, %v2178
        %v2187 = vmul.f32 %v2172, %v2178
        %v2188 = vld [vmem:[%s3] sm:$0x1]
        %v2190 = vlaneseq
        %v2191 = vshrl.u32 %v2190, 7
        %v2192 = vsub.s32 0, %v2191
        %v2193 = vrot.slane %v2188, %v2192
        %v2195 = vadd.f32 %v2180, %v2193
        %v2196 = vadd.f32 %v2181, %v2193
        %v2197 = vadd.f32 %v2182, %v2193
        %v2198 = vadd.f32 %v2183, %v2193
        %v2199 = vadd.f32 %v2184, %v2193
        %v2200 = vadd.f32 %v2185, %v2193
        %v2201 = vadd.f32 %v2186, %v2193
        %v2202 = vadd.f32 %v2187, %v2193
        %2203 = vst [vmem:[%s230] sm:$0xff] %v2195
        %2204 = vst [vmem:[%s230 + $0x8] sm:$0xff] %v2196
        %2205 = vst [vmem:[%s230 + $0x10] sm:$0xff] %v2197
        %2206 = vst [vmem:[%s230 + $0x18] sm:$0xff] %v2198
        %2207 = vst [vmem:[%s230 + $0x20] sm:$0xff] %v2199
        %2208 = vst [vmem:[%s230 + $0x28] sm:$0xff] %v2200
        %2209 = vst [vmem:[%s230 + $0x30] sm:$0xff] %v2201
        %2210 = vst [vmem:[%s230 + $0x38] sm:$0xff] %v2202
        %s2211 = sand.u32 %s119, 1
        %s2212 = scalar_lea.sflag [#allocation4], %s2211
        %s2213 = sand.u32 %s119, 1
        %s2214 = smul.addr %s2213, 64
        %s2215 = scalar_lea.vmem [#allocation7], %s2214
        // Predicated region
        $region45: #{tpu_custom_call.1} parent=35 // pred_check
          %p2216 = pneg %p129
        $region46: #{tpu_custom_call.1} parent=35 // pred_check_branch
          %2218 = sbr.rel (%p2216) target = $region48
        $region47: #{tpu_custom_call.1} parent=35 // pred_region
          %s2219 = smul.u32 8, %s22
          %s2221 = ssub.s32 1024, 1024
          %2222 = vsyncadd %s2212, %s2221
          %s2223 = smul.addr %s2219, 128
          %s2224 = scalar_lea.hbm %s4, %s2223
          %s2225 = sshll.u32 %s2215, 4
          %s2226 = int_to_ptr.vmem [resolvable:$true] %s2225
          %2231 = dma.vmem_to_hbm [thread:$0]  %s2226, 1024, %s2224, %s2212, 128, 128, 8
        $region48: #{tpu_custom_call.1} parent=35 // pred_fallthru
          _
      $region36: #{tpu_custom_call.1} parent=5 // pred_fallthru
        _
      %p2232 = scmp.le.s32.totalorder 2, %s17
      // Predicated region
      $region49: #{tpu_custom_call.1} parent=5 // pred_check
        %p2233 = pneg %p2232
      $region50: #{tpu_custom_call.1} parent=5 // pred_check_branch
        %2235 = sbr.rel (%p2233) target = $region52
      $region51: #{tpu_custom_call.1} parent=5 // pred_region
        %s2236 = ssub.s32 %s17, 2
        // Predicated region
        $region53: #{tpu_custom_call.1} parent=51 // pred_check
          %p2237 = pneg %p135
        $region54: #{tpu_custom_call.1} parent=51 // pred_check_branch
          %2239 = sbr.rel (%p2237) target = $region56
        $region55: #{tpu_custom_call.1} parent=51 // pred_region
          %s2240 = sand.u32 %s120, 1
          %s2241 = scalar_lea.sflag [#allocation4], %s2240
          %s2242 = sand.u32 %s120, 1
          %s2243 = smul.addr %s2242, 64
          %s2244 = scalar_lea.vmem [#allocation7], %s2243
          %2245 = dma.done %s2241, 1024
        $region56: #{tpu_custom_call.1} parent=51 // pred_fallthru
          _
      $region52: #{tpu_custom_call.1} parent=5 // pred_fallthru
        _
    $region6: #{tpu_custom_call.1} parent=1 // loop_footer
      %s21 = sadd.s32 1, %s17
    $region7: #{tpu_custom_call.1} parent=1 // loop_footer_branch
      %16 = sbr.rel target = $region3
    $region8: #{tpu_custom_call.1} parent=1 // loop_exit
      _
    %2246 = vsyncpa [#allocation3], 1
    %s2247 = scalar_lea.sflag [#allocation3], 1
    %2248 = vsyncpa %s2247, 1
    %2249 = vsyncpa [#allocation6], 1
    %2250 = vsyncpa [#allocation4], 1
    %s2251 = scalar_lea.sflag [#allocation4], 1
    %2252 = vsyncpa %s2251, 1

</llo_original>
